<compile_context>
chip_gen: v7x
topology: tpu7x:2x2x1
jax: 0.10.0
libtpu: 0.0.40
codegen_flags: <defaults>
</compile_context>

<pallas_src>
import functools

import jax
import jax.numpy as jnp
from jax.experimental import pallas as pl
from jax.experimental.pallas import tpu as pltpu

N, C_IN, H, W = 1, 272, 7, 7
C_OUT = 1632
HW = H * W                        # 49 spatial positions
EPS = 1e-5

C_OUT_TILES = 4                   # 4 independent channel tiles
TC_OUT = C_OUT // C_OUT_TILES     # 408 (multiple of 8 -> clean sublane tiling)


def _fused_add_conv_bn_kernel(a_ref, b_ref, w_ref, gamma_ref, beta_ref, o_ref,
                              *, n_valid, eps):
    # a_ref, b_ref : [C_IN, HW]      (same block for every C_OUT tile)
    # w_ref        : [TC_OUT, C_IN]
    # gamma/beta   : [TC_OUT, 1]
    # o_ref        : [TC_OUT, HW]
    s = a_ref[...] + b_ref[...]                                      # elementwise add
    y = jnp.dot(w_ref[...], s, preferred_element_type=jnp.float32)   # 1x1 conv (MXU)

    # Single-pass batch statistics per output channel (reduce over spatial lanes).
    inv_cnt = jnp.float32(1.0 / n_valid)
    sum_y = jnp.sum(y, axis=1, keepdims=True)                        # [TC_OUT, 1]
    sum_y2 = jnp.sum(y * y, axis=1, keepdims=True)                   # [TC_OUT, 1]
    mean = sum_y * inv_cnt
    var = sum_y2 * inv_cnt - mean * mean                             # biased variance
    inv = jax.lax.rsqrt(var + eps)

    # Fold BN affine into one scale/shift -> 2 VPU ops per output element.
    scale = inv * gamma_ref[...]                                     # [TC_OUT, 1]
    shift = beta_ref[...] - mean * scale
    o_ref[...] = y * scale + shift


def fused_add_conv_bn(x397, x383, weight, gamma, beta):
    """x397, x383: [1, C_IN, H, W] NCHW.  weight: [C_OUT, C_IN, 1, 1].
    gamma/beta: [C_OUT].  Returns [1, C_OUT, H, W] NCHW (float32)."""
    # All reshapes below are layout-preserving (free) — no transposes, no padding.
    a = x397.reshape(C_IN, HW).astype(jnp.float32)
    b = x383.reshape(C_IN, HW).astype(jnp.float32)
    w = weight.reshape(C_OUT, C_IN).astype(jnp.float32)
    g = gamma.reshape(C_OUT, 1).astype(jnp.float32)
    bt = beta.reshape(C_OUT, 1).astype(jnp.float32)

    kernel = functools.partial(_fused_add_conv_bn_kernel, n_valid=N * HW, eps=EPS)

    cost = pl.CostEstimate(
        flops=2 * HW * C_IN * C_OUT,
        transcendentals=C_OUT,
        bytes_accessed=(2 * C_IN * HW + C_OUT * C_IN + 2 * C_OUT + C_OUT * HW) * 4,
    )

    out = pl.pallas_call(
        kernel,
        out_shape=jax.ShapeDtypeStruct((C_OUT, HW), jnp.float32),
        grid=(C_OUT_TILES,),
        in_specs=[
            pl.BlockSpec((C_IN, HW), lambda j: (0, 0)),       # a (resident)
            pl.BlockSpec((C_IN, HW), lambda j: (0, 0)),       # b (resident)
            pl.BlockSpec((TC_OUT, C_IN), lambda j: (j, 0)),   # weight tile
            pl.BlockSpec((TC_OUT, 1), lambda j: (j, 0)),      # gamma tile
            pl.BlockSpec((TC_OUT, 1), lambda j: (j, 0)),      # beta tile
        ],
        out_specs=pl.BlockSpec((TC_OUT, HW), lambda j: (j, 0)),
        compiler_params=pltpu.CompilerParams(
            dimension_semantics=("parallel",)),
        cost_estimate=cost,
    )(a, b, w, g, bt)

    # [C_OUT, HW] -> [1, C_OUT, 7, 7]  (free reshape, already NCHW order)
    return out.reshape(N, C_OUT, H, W)


def reference(x397, x383, weight, gamma, beta):
    """Pure-JAX reference of the PyTorch forward (training-mode BN)."""
    s = x397 + x383                                              # [N, C_IN, H, W]
    w = weight.reshape(C_OUT, C_IN)
    y = jnp.einsum("nchw,oc->nohw", s, w)                        # 1x1 conv, no bias
    mean = jnp.mean(y, axis=(0, 2, 3), keepdims=True)
    var = jnp.mean((y - mean) ** 2, axis=(0, 2, 3), keepdims=True)   # biased
    return (y - mean) / jnp.sqrt(var + EPS) * gamma.reshape(1, C_OUT, 1, 1) \
           + beta.reshape(1, C_OUT, 1, 1)


if __name__ == "__main__":
    key = jax.random.PRNGKey(0)
    k1, k2, k3, k4, k5 = jax.random.split(key, 5)

    x397 = jax.random.normal(k1, (N, C_IN, H, W), dtype=jnp.float32)
    x383 = jax.random.normal(k2, (N, C_IN, H, W), dtype=jnp.float32)

    # Deterministic parameter init (shapes from the module's __init__).
    weight = 0.05 * jax.random.normal(k3, (C_OUT, C_IN, 1, 1), dtype=jnp.float32)
    gamma = 1.0 + 0.1 * jax.random.normal(k4, (C_OUT,), dtype=jnp.float32)
    beta = 0.1 * jax.random.normal(k5, (C_OUT,), dtype=jnp.float32)

    out = fused_add_conv_bn(x397, x383, weight, gamma, beta)
    out = jax.block_until_ready(out)

    ref = reference(x397, x383, weight, gamma, beta)
    assert out.shape == (N, C_OUT, H, W), out.shape
    assert jnp.allclose(out, ref, atol=1e-3, rtol=1e-3), float(jnp.max(jnp.abs(out - ref)))
    print("KERNEL_OK")
</pallas_src>

<mosaic_0001>
module attributes {stable_mosaic.version = 11 : i64} {
  func.func @_fused_add_conv_bn_kernel(%arg0: i32, %arg1: memref<272x49xf32, #tpu.memory_space<vmem>>, %arg2: memref<272x49xf32, #tpu.memory_space<vmem>>, %arg3: memref<408x272xf32, #tpu.memory_space<vmem>>, %arg4: memref<408x1xf32, #tpu.memory_space<vmem>>, %arg5: memref<408x1xf32, #tpu.memory_space<vmem>>, %arg6: memref<408x49xf32, #tpu.memory_space<vmem>>) attributes {dimension_semantics = [#tpu.dimension_semantics<parallel>], iteration_bounds = array<i64: 4>, scalar_prefetch = 0 : i64, scratch_operands = 0 : i64, tpu.core_type = #tpu.core_type<tc>, window_params = [{pipeline_mode = #tpu.pipeline_mode<synchronous>, transform_indices = @transform_0, window_bounds = array<i64: 272, 49>}, {pipeline_mode = #tpu.pipeline_mode<synchronous>, transform_indices = @transform_1, window_bounds = array<i64: 272, 49>}, {transform_indices = @transform_2, window_bounds = array<i64: 408, 272>}, {transform_indices = @transform_3, window_bounds = array<i64: 408, 1>}, {transform_indices = @transform_4, window_bounds = array<i64: 408, 1>}, {transform_indices = @transform_5, window_bounds = array<i64: 408, 49>}]} {
    %c0 = arith.constant 0 : index
    %c0_0 = arith.constant 0 : index
    %0 = vector.load %arg1[%c0, %c0_0] : memref<272x49xf32, #tpu.memory_space<vmem>>, vector<272x49xf32>
    %c0_1 = arith.constant 0 : index
    %c0_2 = arith.constant 0 : index
    %1 = vector.load %arg2[%c0_1, %c0_2] : memref<272x49xf32, #tpu.memory_space<vmem>>, vector<272x49xf32>
    %2 = arith.addf %0, %1 : vector<272x49xf32>
    %c0_3 = arith.constant 0 : index
    %c0_4 = arith.constant 0 : index
    %3 = vector.load %arg3[%c0_3, %c0_4] : memref<408x272xf32, #tpu.memory_space<vmem>>, vector<408x272xf32>
    %cst = arith.constant dense<0.000000e+00> : vector<408x49xf32>
    %4 = tpu.matmul %3, %2, %cst {dimension_numbers = #tpu.dot_dimension_numbers<[1], [0], [0], [1], [0, 0, 1, 1], [], []>} : vector<408x272xf32>, vector<272x49xf32>, vector<408x49xf32> -> vector<408x49xf32>
    %cst_5 = arith.constant dense<0.000000e+00> : vector<408xf32>
    %5 = vector.multi_reduction <add>, %4, %cst_5 [1] : vector<408x49xf32> to vector<408xf32>
    %6 = vector.shape_cast %5 : vector<408xf32> to vector<408x1xf32>
    %7 = arith.mulf %4, %4 : vector<408x49xf32>
    %cst_6 = arith.constant dense<0.000000e+00> : vector<408xf32>
    %8 = vector.multi_reduction <add>, %7, %cst_6 [1] : vector<408x49xf32> to vector<408xf32>
    %9 = vector.shape_cast %8 : vector<408xf32> to vector<408x1xf32>
    %cst_7 = arith.constant 0.0204081628 : f32
    %10 = vector.broadcast %cst_7 : f32 to vector<408x1xf32>
    %11 = arith.mulf %6, %10 : vector<408x1xf32>
    %cst_8 = arith.constant 0.0204081628 : f32
    %12 = vector.broadcast %cst_8 : f32 to vector<408x1xf32>
    %13 = arith.mulf %9, %12 : vector<408x1xf32>
    %14 = arith.mulf %11, %11 : vector<408x1xf32>
    %15 = arith.subf %13, %14 : vector<408x1xf32>
    %cst_9 = arith.constant 9.99999974E-6 : f32
    %16 = vector.broadcast %cst_9 : f32 to vector<408x1xf32>
    %17 = arith.addf %15, %16 : vector<408x1xf32>
    %18 = math.rsqrt %17 : vector<408x1xf32>
    %c0_10 = arith.constant 0 : index
    %c0_11 = arith.constant 0 : index
    %19 = vector.load %arg4[%c0_10, %c0_11] : memref<408x1xf32, #tpu.memory_space<vmem>>, vector<408x1xf32>
    %20 = arith.mulf %18, %19 : vector<408x1xf32>
    %c0_12 = arith.constant 0 : index
    %c0_13 = arith.constant 0 : index
    %21 = vector.load %arg5[%c0_12, %c0_13] : memref<408x1xf32, #tpu.memory_space<vmem>>, vector<408x1xf32>
    %22 = arith.mulf %11, %20 : vector<408x1xf32>
    %23 = arith.subf %21, %22 : vector<408x1xf32>
    %24 = vector.broadcast %20 : vector<408x1xf32> to vector<408x49xf32>
    %25 = arith.mulf %4, %24 : vector<408x49xf32>
    %26 = vector.broadcast %23 : vector<408x1xf32> to vector<408x49xf32>
    %27 = arith.addf %25, %26 : vector<408x49xf32>
    %c0_14 = arith.constant 0 : index
    %c0_15 = arith.constant 0 : index
    %28 = vector.load %arg6[%c0_14, %c0_15] : memref<408x49xf32, #tpu.memory_space<vmem>>, vector<408x49xf32>
    tpu.vector_store %arg6[%c0_14, %c0_15], %27 {strides = array<i32>} : memref<408x49xf32, #tpu.memory_space<vmem>>, vector<408x49xf32>,
    return
  }
  func.func @transform_0(%arg0: i32) -> (i32, i32) {
    %c0_i32 = arith.constant 0 : i32
    %c0_i32_0 = arith.constant 0 : i32
    %c0_i32_1 = arith.constant 0 : i32
    return %c0_i32, %c0_i32_0 : i32, i32
  }
  func.func @transform_1(%arg0: i32) -> (i32, i32) {
    %c0_i32 = arith.constant 0 : i32
    %c0_i32_0 = arith.constant 0 : i32
    %c0_i32_1 = arith.constant 0 : i32
    return %c0_i32, %c0_i32_0 : i32, i32
  }
  func.func @transform_2(%arg0: i32) -> (i32, i32) {
    %c0_i32 = arith.constant 0 : i32
    %c0_i32_0 = arith.constant 0 : i32
    return %arg0, %c0_i32 : i32, i32
  }
  func.func @transform_3(%arg0: i32) -> (i32, i32) {
    %c0_i32 = arith.constant 0 : i32
    %c0_i32_0 = arith.constant 0 : i32
    return %arg0, %c0_i32 : i32, i32
  }
  func.func @transform_4(%arg0: i32) -> (i32, i32) {
    %c0_i32 = arith.constant 0 : i32
    %c0_i32_0 = arith.constant 0 : i32
    return %arg0, %c0_i32 : i32, i32
  }
  func.func @transform_5(%arg0: i32) -> (i32, i32) {
    %c0_i32 = arith.constant 0 : i32
    %c0_i32_0 = arith.constant 0 : i32
    return %arg0, %c0_i32 : i32, i32
  }
}

</mosaic_0001>

<llo_original>
// kernel: tpu_custom_call.1
$region0: #{tpu_custom_call.1}
  #allocation0 [shape = 'u32[]', space=smem, size = 0x4, offset = 0x4, fixed_abs, tag = 'smem constant byte address 0x4 - core index']
  #allocation1 [shape = 'u32[144,128]{1,0:T(1,128)}', space=vmem, size = 0x12000, scoped, tag = 'internal scratch']
  %s0 = inlined_call_operand.vmem [shape: f32[272,49], index: 0, kind: input, shape index: {}]
  %s1 = inlined_call_operand.vmem [shape: f32[272,49], index: 1, kind: input, shape index: {}]
  %s2 = inlined_call_operand.vmem [shape: f32[1632,272], index: 2, kind: input, shape index: {}]
  %s3 = inlined_call_operand.vmem [shape: f32[1632,1], index: 3, kind: input, shape index: {}]
  %s4 = inlined_call_operand.vmem [shape: f32[1632,1], index: 4, kind: input, shape index: {}]
  %s5 = inlined_call_operand.vmem [shape: f32[1632,49], index: 5, kind: output, shape index: {}]
  %s6 = sld [smem:[#allocation0]]
  $region53: #{tpu_custom_call.1} parent=0
    _
  %s8 = ssub.s32 1, %s6
  %s9 = scalar_select 0, %s8, %s6
  loop: start=0, step=1, limit=6
  $region2: #{tpu_custom_call.1} parent=0 // loop_pre_header
    _
  $region3: #{tpu_custom_call.1} parent=0 // loop_header
    %s11 = sphi 0, %s15
    %p12 = scmp.ge.s32.totalorder %s11, 6
    %s19 = sphi 0, %s19
    %s21 = sphi 0, %s19
    %s22 = sphi 0, %s21
    %s36 = sphi 0, %s22
    %s40 = sphi 0, %s40
    %s42 = sphi 0, %s40
    %s43 = sphi 0, %s42
    %s57 = sphi 0, %s43
    %s63 = sphi 0, %s65
    %s66 = sphi 0, %s63
    %s67 = sphi 0, %s66
    %s83 = sphi 0, %s67
    %s89 = sphi 0, %s91
    %s92 = sphi 0, %s89
    %s93 = sphi 0, %s92
    %s109 = sphi 0, %s93
    %s115 = sphi 0, %s117
    %s118 = sphi 0, %s115
    %s119 = sphi 0, %s118
    %s135 = sphi 0, %s119
    %s141 = sphi 0, %s143
    %s144 = sphi 0, %s141
    %s145 = sphi 0, %s144
    %s161 = sphi 0, %s145
  $region4: #{tpu_custom_call.1} parent=0 // loop_header_branch
    %14 = sbr.rel (%p12) target = $region8
  $region5: #{tpu_custom_call.1} parent=0 // loop_body
    %s16 = ssub.s32 %s11, 1
    %s17 = ssub.s32 %s11, 2
    %s18 = sadd.s32 %s11, 1
    %s20 = sadd.s32 %s19, 1
    %p23 = scmp.eq.s32.totalorder %s11, 3
    %p24 = scmp.ne.s32.totalorder %s19, %s21
    %p25 = scmp.eq.s32.totalorder %s11, 0
    %p26 = por %p24, %p25
    %p27 = scmp.ne.s32.totalorder %s19, %s21
    %p28 = scmp.eq.s32.totalorder %s16, 3
    %p29 = por %p27, %p28
    %p30 = scmp.ne.s32.totalorder %s21, %s22
    %p31 = scmp.eq.s32.totalorder %s16, 0
    %p32 = por %p30, %p31
    %p33 = scmp.ne.s32.totalorder %s21, %s22
    %p34 = scmp.eq.s32.totalorder %s17, 3
    %p35 = por %p33, %p34
    %p37 = scmp.ne.s32.totalorder %s22, %s36
    %p38 = scmp.eq.s32.totalorder %s17, 0
    %p39 = por %p37, %p38
    %s41 = sadd.s32 %s40, 1
    %p44 = scmp.eq.s32.totalorder %s11, 3
    %p45 = scmp.ne.s32.totalorder %s40, %s42
    %p46 = scmp.eq.s32.totalorder %s11, 0
    %p47 = por %p45, %p46
    %p48 = scmp.ne.s32.totalorder %s40, %s42
    %p49 = scmp.eq.s32.totalorder %s16, 3
    %p50 = por %p48, %p49
    %p51 = scmp.ne.s32.totalorder %s42, %s43
    %p52 = scmp.eq.s32.totalorder %s16, 0
    %p53 = por %p51, %p52
    %p54 = scmp.ne.s32.totalorder %s42, %s43
    %p55 = scmp.eq.s32.totalorder %s17, 3
    %p56 = por %p54, %p55
    %p58 = scmp.ne.s32.totalorder %s43, %s57
    %p59 = scmp.eq.s32.totalorder %s17, 0
    %p60 = por %p58, %p59
    %s61 = ssub.s32 %s11, %s18
    %p62 = scmp.eq.s32.totalorder %s61, 0
    %s64 = sadd.s32 %s63, 1
    %s65 = scalar_select %p62, %s63, %s64
    %p68 = pneg %p62
    %p69 = scmp.eq.s32.totalorder %s11, 3
    %p70 = por %p68, %p69
    %p71 = scmp.ne.s32.totalorder %s63, %s66
    %p72 = scmp.eq.s32.totalorder %s11, 0
    %p73 = por %p71, %p72
    %p74 = scmp.ne.s32.totalorder %s63, %s66
    %p75 = scmp.eq.s32.totalorder %s16, 3
    %p76 = por %p74, %p75
    %p77 = scmp.ne.s32.totalorder %s66, %s67
    %p78 = scmp.eq.s32.totalorder %s16, 0
    %p79 = por %p77, %p78
    %p80 = scmp.ne.s32.totalorder %s66, %s67
    %p81 = scmp.eq.s32.totalorder %s17, 3
    %p82 = por %p80, %p81
    %p84 = scmp.ne.s32.totalorder %s67, %s83
    %p85 = scmp.eq.s32.totalorder %s17, 0
    %p86 = por %p84, %p85
    %s87 = ssub.s32 %s11, %s18
    %p88 = scmp.eq.s32.totalorder %s87, 0
    %s90 = sadd.s32 %s89, 1
    %s91 = scalar_select %p88, %s89, %s90
    %p94 = pneg %p88
    %p95 = scmp.eq.s32.totalorder %s11, 3
    %p96 = por %p94, %p95
    %p97 = scmp.ne.s32.totalorder %s89, %s92
    %p98 = scmp.eq.s32.totalorder %s11, 0
    %p99 = por %p97, %p98
    %p100 = scmp.ne.s32.totalorder %s89, %s92
    %p101 = scmp.eq.s32.totalorder %s16, 3
    %p102 = por %p100, %p101
    %p103 = scmp.ne.s32.totalorder %s92, %s93
    %p104 = scmp.eq.s32.totalorder %s16, 0
    %p105 = por %p103, %p104
    %p106 = scmp.ne.s32.totalorder %s92, %s93
    %p107 = scmp.eq.s32.totalorder %s17, 3
    %p108 = por %p106, %p107
    %p110 = scmp.ne.s32.totalorder %s93, %s109
    %p111 = scmp.eq.s32.totalorder %s17, 0
    %p112 = por %p110, %p111
    %s113 = ssub.s32 %s11, %s18
    %p114 = scmp.eq.s32.totalorder %s113, 0
    %s116 = sadd.s32 %s115, 1
    %s117 = scalar_select %p114, %s115, %s116
    %p120 = pneg %p114
    %p121 = scmp.eq.s32.totalorder %s11, 3
    %p122 = por %p120, %p121
    %p123 = scmp.ne.s32.totalorder %s115, %s118
    %p124 = scmp.eq.s32.totalorder %s11, 0
    %p125 = por %p123, %p124
    %p126 = scmp.ne.s32.totalorder %s115, %s118
    %p127 = scmp.eq.s32.totalorder %s16, 3
    %p128 = por %p126, %p127
    %p129 = scmp.ne.s32.totalorder %s118, %s119
    %p130 = scmp.eq.s32.totalorder %s16, 0
    %p131 = por %p129, %p130
    %p132 = scmp.ne.s32.totalorder %s118, %s119
    %p133 = scmp.eq.s32.totalorder %s17, 3
    %p134 = por %p132, %p133
    %p136 = scmp.ne.s32.totalorder %s119, %s135
    %p137 = scmp.eq.s32.totalorder %s17, 0
    %p138 = por %p136, %p137
    %s139 = ssub.s32 %s11, %s18
    %p140 = scmp.eq.s32.totalorder %s139, 0
    %s142 = sadd.s32 %s141, 1
    %s143 = scalar_select %p140, %s141, %s142
    %p146 = pneg %p140
    %p147 = scmp.eq.s32.totalorder %s11, 3
    %p148 = por %p146, %p147
    %p149 = scmp.ne.s32.totalorder %s141, %s144
    %p150 = scmp.eq.s32.totalorder %s11, 0
    %p151 = por %p149, %p150
    %p152 = scmp.ne.s32.totalorder %s141, %s144
    %p153 = scmp.eq.s32.totalorder %s16, 3
    %p154 = por %p152, %p153
    %p155 = scmp.ne.s32.totalorder %s144, %s145
    %p156 = scmp.eq.s32.totalorder %s16, 0
    %p157 = por %p155, %p156
    %p158 = scmp.ne.s32.totalorder %s144, %s145
    %p159 = scmp.eq.s32.totalorder %s17, 3
    %p160 = por %p158, %p159
    %p162 = scmp.ne.s32.totalorder %s145, %s161
    %p163 = scmp.eq.s32.totalorder %s17, 0
    %p164 = por %p162, %p163
    %p165 = scmp.le.s32.totalorder 1, %s11
    %p166 = scmp.lt.s32.totalorder %s11, 5
    %p167 = pnand %p165, %p166
    %p168 = pneg %p167
    // Predicated region
    $region9: #{tpu_custom_call.1} parent=5 // pred_check
      _
    $region10: #{tpu_custom_call.1} parent=5 // pred_check_branch
      %170 = sbr.rel (%p167) target = $region12
    $region11: #{tpu_custom_call.1} parent=5 // pred_region
      %s171 = ssub.s32 %s11, 1
      // Predicated region
      $region13: #{tpu_custom_call.1} parent=11 // pred_check
        %p172 = pneg %p32
      $region14: #{tpu_custom_call.1} parent=11 // pred_check_branch
        %174 = sbr.rel (%p172) target = $region16
      $region15: #{tpu_custom_call.1} parent=11 // pred_region
        _
      $region16: #{tpu_custom_call.1} parent=11 // pred_fallthru
        _
      // Predicated region
      $region17: #{tpu_custom_call.1} parent=11 // pred_check
        %p175 = pneg %p53
      $region18: #{tpu_custom_call.1} parent=11 // pred_check_branch
        %177 = sbr.rel (%p175) target = $region20
      $region19: #{tpu_custom_call.1} parent=11 // pred_region
        _
      $region20: #{tpu_custom_call.1} parent=11 // pred_fallthru
        _
    $region12: #{tpu_custom_call.1} parent=5 // pred_fallthru
      _
    %p178 = scmp.lt.s32.totalorder %s11, 4
    // Predicated region
    $region21: #{tpu_custom_call.1} parent=5 // pred_check
      %p179 = pneg %p178
    $region22: #{tpu_custom_call.1} parent=5 // pred_check_branch
      %181 = sbr.rel (%p179) target = $region24
    $region23: #{tpu_custom_call.1} parent=5 // pred_region
      // Predicated region
      $region25: #{tpu_custom_call.1} parent=23 // pred_check
        %p182 = pneg %p73
      $region26: #{tpu_custom_call.1} parent=23 // pred_check_branch
        %184 = sbr.rel (%p182) target = $region28
      $region27: #{tpu_custom_call.1} parent=23 // pred_region
        %s185 = smul.u32 51, %s11
        %p186 = scmp.lt.s32.totalorder %s185, 203
        %s187 = scalar_select %p186, %s185, 203
        %s188 = smul.addr %s187, 3
        %s189 = smul.addr %s188, 8
        %s190 = scalar_lea.vmem %s2, %s189
        %s191 = smul.u32 51, %s11
      $region28: #{tpu_custom_call.1} parent=23 // pred_fallthru
        _
      // Predicated region
      $region29: #{tpu_custom_call.1} parent=23 // pred_check
        %p192 = pneg %p99
      $region30: #{tpu_custom_call.1} parent=23 // pred_check_branch
        %194 = sbr.rel (%p192) target = $region32
      $region31: #{tpu_custom_call.1} parent=23 // pred_region
        %s195 = smul.u32 51, %s11
        %p196 = scmp.lt.s32.totalorder %s195, 203
        %s197 = scalar_select %p196, %s195, 203
        %s198 = smul.addr %s197, 8
        %s199 = scalar_lea.vmem %s3, %s198
        %s200 = smul.u32 51, %s11
      $region32: #{tpu_custom_call.1} parent=23 // pred_fallthru
        _
      // Predicated region
      $region33: #{tpu_custom_call.1} parent=23 // pred_check
        %p201 = pneg %p125
      $region34: #{tpu_custom_call.1} parent=23 // pred_check_branch
        %203 = sbr.rel (%p201) target = $region36
      $region35: #{tpu_custom_call.1} parent=23 // pred_region
        %s204 = smul.u32 51, %s11
        %p205 = scmp.lt.s32.totalorder %s204, 203
        %s206 = scalar_select %p205, %s204, 203
        %s207 = smul.addr %s206, 8
        %s208 = scalar_lea.vmem %s4, %s207
        %s209 = smul.u32 51, %s11
      $region36: #{tpu_custom_call.1} parent=23 // pred_fallthru
        _
    $region24: #{tpu_custom_call.1} parent=5 // pred_fallthru
      _
    %p210 = scmp.le.s32.totalorder 1, %s11
    %p211 = scmp.lt.s32.totalorder %s11, 5
    %p212 = pnand %p210, %p211
    %p213 = pneg %p212
    // Predicated region
    $region37: #{tpu_custom_call.1} parent=5 // pred_check
      _
    $region38: #{tpu_custom_call.1} parent=5 // pred_check_branch
      %215 = sbr.rel (%p212) target = $region40
    $region39: #{tpu_custom_call.1} parent=5 // pred_region
      %s216 = ssub.s32 %s11, 1
      %p217 = pneg %p32
      %p218 = pneg %p29
      %p219 = pneg %p53
      %p220 = pneg %p50
      %s221 = smul.u32 51, %s16
      %p222 = scmp.lt.s32.totalorder %s221, 203
      %s223 = scalar_select %p222, %s221, 203
      %s224 = smul.addr %s223, 3
      %s225 = smul.addr %s224, 8
      %s226 = scalar_lea.vmem %s2, %s225
      %p227 = pneg %p79
      %p228 = pneg %p76
      %s229 = smul.u32 51, %s16
      %p230 = scmp.lt.s32.totalorder %s229, 203
      %s231 = scalar_select %p230, %s229, 203
      %s232 = smul.addr %s231, 8
      %s233 = scalar_lea.vmem %s3, %s232
      %p234 = pneg %p105
      %p235 = pneg %p102
      %s236 = smul.u32 51, %s16
      %p237 = scmp.lt.s32.totalorder %s236, 203
      %s238 = scalar_select %p237, %s236, 203
      %s239 = smul.addr %s238, 8
      %s240 = scalar_lea.vmem %s4, %s239
      %p241 = pneg %p131
      %p242 = pneg %p128
      %p243 = pneg %p157
      %p244 = pneg %p154
      %s245 = smul.u32 51, %s16
      %p246 = scmp.lt.s32.totalorder %s245, 203
      %s247 = scalar_select %p246, %s245, 203
      %s248 = smul.addr %s247, 8
      %s249 = scalar_lea.vmem %s5, %s248
      %s250 = smul.u32 51, %s16
      %p251 = scmp.lt.s32.totalorder %s250, 203
      %s252 = scalar_select %p251, %s250, 203
      %s253 = smul.addr %s252, 3
      %s254 = smul.addr %s253, 8
      %s255 = scalar_lea.vmem %s2, %s254
      %s256 = smul.u32 51, %s16
      %s257 = smul.u32 51, %s16
      %p258 = scmp.lt.s32.totalorder %s257, 203
      %s259 = scalar_select %p258, %s257, 203
      %s260 = smul.addr %s259, 8
      %s261 = scalar_lea.vmem %s3, %s260
      %s262 = smul.u32 51, %s16
      %s263 = smul.u32 51, %s16
      %p264 = scmp.lt.s32.totalorder %s263, 203
      %s265 = scalar_select %p264, %s263, 203
      %s266 = smul.addr %s265, 8
      %s267 = scalar_lea.vmem %s4, %s266
      %s268 = smul.u32 51, %s16
      %s269 = smul.u32 51, %s16
      %p270 = scmp.lt.s32.totalorder %s269, 203
      %s271 = scalar_select %p270, %s269, 203
      %s272 = smul.addr %s271, 8
      %s273 = scalar_lea.vmem %s5, %s272
      %s274 = smul.u32 51, %s16
      %v275 = vld [vmem:[%s0] sm:$0xff]
      %v276 = vld [vmem:[%s0 + $0x8] sm:$0xff]
      %v277 = vld [vmem:[%s0 + $0x10] sm:$0xff]
      %v278 = vld [vmem:[%s0 + $0x18] sm:$0xff]
      %v279 = vld [vmem:[%s0 + $0x20] sm:$0xff]
      %v280 = vld [vmem:[%s0 + $0x28] sm:$0xff]
      %v281 = vld [vmem:[%s0 + $0x30] sm:$0xff]
      %v282 = vld [vmem:[%s0 + $0x38] sm:$0xff]
      %v283 = vld [vmem:[%s0 + $0x40] sm:$0xff]
      %v284 = vld [vmem:[%s0 + $0x48] sm:$0xff]
      %v285 = vld [vmem:[%s0 + $0x50] sm:$0xff]
      %v286 = vld [vmem:[%s0 + $0x58] sm:$0xff]
      %v287 = vld [vmem:[%s0 + $0x60] sm:$0xff]
      %v288 = vld [vmem:[%s0 + $0x68] sm:$0xff]
      %v289 = vld [vmem:[%s0 + $0x70] sm:$0xff]
      %v290 = vld [vmem:[%s0 + $0x78] sm:$0xff]
      %v291 = vld [vmem:[%s0 + $0x80] sm:$0xff]
      %v292 = vld [vmem:[%s0 + $0x88] sm:$0xff]
      %v293 = vld [vmem:[%s0 + $0x90] sm:$0xff]
      %v294 = vld [vmem:[%s0 + $0x98] sm:$0xff]
      %v295 = vld [vmem:[%s0 + $0xa0] sm:$0xff]
      %v296 = vld [vmem:[%s0 + $0xa8] sm:$0xff]
      %v297 = vld [vmem:[%s0 + $0xb0] sm:$0xff]
      %v298 = vld [vmem:[%s0 + $0xb8] sm:$0xff]
      %v299 = vld [vmem:[%s0 + $0xc0] sm:$0xff]
      %v300 = vld [vmem:[%s0 + $0xc8] sm:$0xff]
      %v301 = vld [vmem:[%s0 + $0xd0] sm:$0xff]
      %v302 = vld [vmem:[%s0 + $0xd8] sm:$0xff]
      %v303 = vld [vmem:[%s0 + $0xe0] sm:$0xff]
      %v304 = vld [vmem:[%s0 + $0xe8] sm:$0xff]
      %v305 = vld [vmem:[%s0 + $0xf0] sm:$0xff]
      %v306 = vld [vmem:[%s0 + $0xf8] sm:$0xff]
      %v307 = vld [vmem:[%s0 + $0x100] sm:$0xff]
      %v308 = vld [vmem:[%s0 + $0x108] sm:$0xff]
      %v309 = vld [vmem:[%s1] sm:$0xff]
      %v310 = vld [vmem:[%s1 + $0x8] sm:$0xff]
      %v311 = vld [vmem:[%s1 + $0x10] sm:$0xff]
      %v312 = vld [vmem:[%s1 + $0x18] sm:$0xff]
      %v313 = vld [vmem:[%s1 + $0x20] sm:$0xff]
      %v314 = vld [vmem:[%s1 + $0x28] sm:$0xff]
      %v315 = vld [vmem:[%s1 + $0x30] sm:$0xff]
      %v316 = vld [vmem:[%s1 + $0x38] sm:$0xff]
      %v317 = vld [vmem:[%s1 + $0x40] sm:$0xff]
      %v318 = vld [vmem:[%s1 + $0x48] sm:$0xff]
      %v319 = vld [vmem:[%s1 + $0x50] sm:$0xff]
      %v320 = vld [vmem:[%s1 + $0x58] sm:$0xff]
      %v321 = vld [vmem:[%s1 + $0x60] sm:$0xff]
      %v322 = vld [vmem:[%s1 + $0x68] sm:$0xff]
      %v323 = vld [vmem:[%s1 + $0x70] sm:$0xff]
      %v324 = vld [vmem:[%s1 + $0x78] sm:$0xff]
      %v325 = vld [vmem:[%s1 + $0x80] sm:$0xff]
      %v326 = vld [vmem:[%s1 + $0x88] sm:$0xff]
      %v327 = vld [vmem:[%s1 + $0x90] sm:$0xff]
      %v328 = vld [vmem:[%s1 + $0x98] sm:$0xff]
      %v329 = vld [vmem:[%s1 + $0xa0] sm:$0xff]
      %v330 = vld [vmem:[%s1 + $0xa8] sm:$0xff]
      %v331 = vld [vmem:[%s1 + $0xb0] sm:$0xff]
      %v332 = vld [vmem:[%s1 + $0xb8] sm:$0xff]
      %v333 = vld [vmem:[%s1 + $0xc0] sm:$0xff]
      %v334 = vld [vmem:[%s1 + $0xc8] sm:$0xff]
      %v335 = vld [vmem:[%s1 + $0xd0] sm:$0xff]
      %v336 = vld [vmem:[%s1 + $0xd8] sm:$0xff]
      %v337 = vld [vmem:[%s1 + $0xe0] sm:$0xff]
      %v338 = vld [vmem:[%s1 + $0xe8] sm:$0xff]
      %v339 = vld [vmem:[%s1 + $0xf0] sm:$0xff]
      %v340 = vld [vmem:[%s1 + $0xf8] sm:$0xff]
      %v341 = vld [vmem:[%s1 + $0x100] sm:$0xff]
      %v342 = vld [vmem:[%s1 + $0x108] sm:$0xff]
      %v343 = vadd.f32 %v275, %v309
      %v344 = vadd.f32 %v276, %v310
      %v345 = vadd.f32 %v277, %v311
      %v346 = vadd.f32 %v278, %v312
      %v347 = vadd.f32 %v279, %v313
      %v348 = vadd.f32 %v280, %v314
      %v349 = vadd.f32 %v281, %v315
      %v350 = vadd.f32 %v282, %v316
      %v351 = vadd.f32 %v283, %v317
      %v352 = vadd.f32 %v284, %v318
      %v353 = vadd.f32 %v285, %v319
      %v354 = vadd.f32 %v286, %v320
      %v355 = vadd.f32 %v287, %v321
      %v356 = vadd.f32 %v288, %v322
      %v357 = vadd.f32 %v289, %v323
      %v358 = vadd.f32 %v290, %v324
      %v359 = vadd.f32 %v291, %v325
      %v360 = vadd.f32 %v292, %v326
      %v361 = vadd.f32 %v293, %v327
      %v362 = vadd.f32 %v294, %v328
      %v363 = vadd.f32 %v295, %v329
      %v364 = vadd.f32 %v296, %v330
      %v365 = vadd.f32 %v297, %v331
      %v366 = vadd.f32 %v298, %v332
      %v367 = vadd.f32 %v299, %v333
      %v368 = vadd.f32 %v300, %v334
      %v369 = vadd.f32 %v301, %v335
      %v370 = vadd.f32 %v302, %v336
      %v371 = vadd.f32 %v303, %v337
      %v372 = vadd.f32 %v304, %v338
      %v373 = vadd.f32 %v305, %v339
      %v374 = vadd.f32 %v306, %v340
      %v375 = vadd.f32 %v307, %v341
      %v376 = vadd.f32 %v308, %v342
      %v377 = vld [vmem:[%s255] sm:$0xff]
      %v378 = vld [vmem:[%s255 + $0x8] sm:$0xff]
      %v379 = vld [vmem:[%s255 + $0x10] sm:$0xff]
      %v380 = vld [vmem:[%s255 + $0x18] sm:$0xff]
      %v381 = vld [vmem:[%s255 + $0x20] sm:$0xff]
      %v382 = vld [vmem:[%s255 + $0x28] sm:$0xff]
      %v383 = vld [vmem:[%s255 + $0x30] sm:$0xff]
      %v384 = vld [vmem:[%s255 + $0x38] sm:$0xff]
      %v385 = vld [vmem:[%s255 + $0x40] sm:$0xff]
      %v386 = vld [vmem:[%s255 + $0x48] sm:$0xff]
      %v387 = vld [vmem:[%s255 + $0x50] sm:$0xff]
      %v388 = vld [vmem:[%s255 + $0x58] sm:$0xff]
      %v389 = vld [vmem:[%s255 + $0x60] sm:$0xff]
      %v390 = vld [vmem:[%s255 + $0x68] sm:$0xff]
      %v391 = vld [vmem:[%s255 + $0x70] sm:$0xff]
      %v392 = vld [vmem:[%s255 + $0x78] sm:$0xff]
      %v393 = vld [vmem:[%s255 + $0x80] sm:$0xff]
      %v394 = vld [vmem:[%s255 + $0x88] sm:$0xff]
      %v395 = vld [vmem:[%s255 + $0x90] sm:$0xff]
      %v396 = vld [vmem:[%s255 + $0x98] sm:$0xff]
      %v397 = vld [vmem:[%s255 + $0xa0] sm:$0xff]
      %v398 = vld [vmem:[%s255 + $0xa8] sm:$0xff]
      %v399 = vld [vmem:[%s255 + $0xb0] sm:$0xff]
      %v400 = vld [vmem:[%s255 + $0xb8] sm:$0xff]
      %v401 = vld [vmem:[%s255 + $0xc0] sm:$0xff]
      %v402 = vld [vmem:[%s255 + $0xc8] sm:$0xff]
      %v403 = vld [vmem:[%s255 + $0xd0] sm:$0xff]
      %v404 = vld [vmem:[%s255 + $0xd8] sm:$0xff]
      %v405 = vld [vmem:[%s255 + $0xe0] sm:$0xff]
      %v406 = vld [vmem:[%s255 + $0xe8] sm:$0xff]
      %v407 = vld [vmem:[%s255 + $0xf0] sm:$0xff]
      %v408 = vld [vmem:[%s255 + $0xf8] sm:$0xff]
      %v409 = vld [vmem:[%s255 + $0x100] sm:$0xff]
      %v410 = vld [vmem:[%s255 + $0x108] sm:$0xff]
      %v411 = vld [vmem:[%s255 + $0x110] sm:$0xff]
      %v412 = vld [vmem:[%s255 + $0x118] sm:$0xff]
      %v413 = vld [vmem:[%s255 + $0x120] sm:$0xff]
      %v414 = vld [vmem:[%s255 + $0x128] sm:$0xff]
      %v415 = vld [vmem:[%s255 + $0x130] sm:$0xff]
      %v416 = vld [vmem:[%s255 + $0x138] sm:$0xff]
      %v417 = vld [vmem:[%s255 + $0x140] sm:$0xff]
      %v418 = vld [vmem:[%s255 + $0x148] sm:$0xff]
      %v419 = vld [vmem:[%s255 + $0x150] sm:$0xff]
      %v420 = vld [vmem:[%s255 + $0x158] sm:$0xff]
      %v421 = vld [vmem:[%s255 + $0x160] sm:$0xff]
      %v422 = vld [vmem:[%s255 + $0x168] sm:$0xff]
      %v423 = vld [vmem:[%s255 + $0x170] sm:$0xff]
      %v424 = vld [vmem:[%s255 + $0x178] sm:$0xff]
      %v425 = vld [vmem:[%s255 + $0x180] sm:$0xff]
      %v426 = vld [vmem:[%s255 + $0x188] sm:$0xff]
      %v427 = vld [vmem:[%s255 + $0x190] sm:$0xff]
      %v428 = vld [vmem:[%s255 + $0x198] sm:$0xff]
      %v429 = vld [vmem:[%s255 + $0x1a0] sm:$0xff]
      %v430 = vld [vmem:[%s255 + $0x1a8] sm:$0xff]
      %v431 = vld [vmem:[%s255 + $0x1b0] sm:$0xff]
      %v432 = vld [vmem:[%s255 + $0x1b8] sm:$0xff]
      %v433 = vld [vmem:[%s255 + $0x1c0] sm:$0xff]
      %v434 = vld [vmem:[%s255 + $0x1c8] sm:$0xff]
      %v435 = vld [vmem:[%s255 + $0x1d0] sm:$0xff]
      %v436 = vld [vmem:[%s255 + $0x1d8] sm:$0xff]
      %v437 = vld [vmem:[%s255 + $0x1e0] sm:$0xff]
      %v438 = vld [vmem:[%s255 + $0x1e8] sm:$0xff]
      %v439 = vld [vmem:[%s255 + $0x1f0] sm:$0xff]
      %v440 = vld [vmem:[%s255 + $0x1f8] sm:$0xff]
      %v441 = vld [vmem:[%s255 + $0x200] sm:$0xff]
      %v442 = vld [vmem:[%s255 + $0x208] sm:$0xff]
      %v443 = vld [vmem:[%s255 + $0x210] sm:$0xff]
      %v444 = vld [vmem:[%s255 + $0x218] sm:$0xff]
      %v445 = vld [vmem:[%s255 + $0x220] sm:$0xff]
      %v446 = vld [vmem:[%s255 + $0x228] sm:$0xff]
      %v447 = vld [vmem:[%s255 + $0x230] sm:$0xff]
      %v448 = vld [vmem:[%s255 + $0x238] sm:$0xff]
      %v449 = vld [vmem:[%s255 + $0x240] sm:$0xff]
      %v450 = vld [vmem:[%s255 + $0x248] sm:$0xff]
      %v451 = vld [vmem:[%s255 + $0x250] sm:$0xff]
      %v452 = vld [vmem:[%s255 + $0x258] sm:$0xff]
      %v453 = vld [vmem:[%s255 + $0x260] sm:$0xff]
      %v454 = vld [vmem:[%s255 + $0x268] sm:$0xff]
      %v455 = vld [vmem:[%s255 + $0x270] sm:$0xff]
      %v456 = vld [vmem:[%s255 + $0x278] sm:$0xff]
      %v457 = vld [vmem:[%s255 + $0x280] sm:$0xff]
      %v458 = vld [vmem:[%s255 + $0x288] sm:$0xff]
      %v459 = vld [vmem:[%s255 + $0x290] sm:$0xff]
      %v460 = vld [vmem:[%s255 + $0x298] sm:$0xff]
      %v461 = vld [vmem:[%s255 + $0x2a0] sm:$0xff]
      %v462 = vld [vmem:[%s255 + $0x2a8] sm:$0xff]
      %v463 = vld [vmem:[%s255 + $0x2b0] sm:$0xff]
      %v464 = vld [vmem:[%s255 + $0x2b8] sm:$0xff]
      %v465 = vld [vmem:[%s255 + $0x2c0] sm:$0xff]
      %v466 = vld [vmem:[%s255 + $0x2c8] sm:$0xff]
      %v467 = vld [vmem:[%s255 + $0x2d0] sm:$0xff]
      %v468 = vld [vmem:[%s255 + $0x2d8] sm:$0xff]
      %v469 = vld [vmem:[%s255 + $0x2e0] sm:$0xff]
      %v470 = vld [vmem:[%s255 + $0x2e8] sm:$0xff]
      %v471 = vld [vmem:[%s255 + $0x2f0] sm:$0xff]
      %v472 = vld [vmem:[%s255 + $0x2f8] sm:$0xff]
      %v473 = vld [vmem:[%s255 + $0x300] sm:$0xff]
      %v474 = vld [vmem:[%s255 + $0x308] sm:$0xff]
      %v475 = vld [vmem:[%s255 + $0x310] sm:$0xff]
      %v476 = vld [vmem:[%s255 + $0x318] sm:$0xff]
      %v477 = vld [vmem:[%s255 + $0x320] sm:$0xff]
      %v478 = vld [vmem:[%s255 + $0x328] sm:$0xff]
      %v479 = vld [vmem:[%s255 + $0x330] sm:$0xff]
      %v480 = vld [vmem:[%s255 + $0x338] sm:$0xff]
      %v481 = vld [vmem:[%s255 + $0x340] sm:$0xff]
      %v482 = vld [vmem:[%s255 + $0x348] sm:$0xff]
      %v483 = vld [vmem:[%s255 + $0x350] sm:$0xff]
      %v484 = vld [vmem:[%s255 + $0x358] sm:$0xff]
      %v485 = vld [vmem:[%s255 + $0x360] sm:$0xff]
      %v486 = vld [vmem:[%s255 + $0x368] sm:$0xff]
      %v487 = vld [vmem:[%s255 + $0x370] sm:$0xff]
      %v488 = vld [vmem:[%s255 + $0x378] sm:$0xff]
      %v489 = vld [vmem:[%s255 + $0x380] sm:$0xff]
      %v490 = vld [vmem:[%s255 + $0x388] sm:$0xff]
      %v491 = vld [vmem:[%s255 + $0x390] sm:$0xff]
      %v492 = vld [vmem:[%s255 + $0x398] sm:$0xff]
      %v493 = vld [vmem:[%s255 + $0x3a0] sm:$0xff]
      %v494 = vld [vmem:[%s255 + $0x3a8] sm:$0xff]
      %v495 = vld [vmem:[%s255 + $0x3b0] sm:$0xff]
      %v496 = vld [vmem:[%s255 + $0x3b8] sm:$0xff]
      %v497 = vld [vmem:[%s255 + $0x3c0] sm:$0xff]
      %v498 = vld [vmem:[%s255 + $0x3c8] sm:$0xff]
      %v499 = vld [vmem:[%s255 + $0x3d0] sm:$0xff]
      %v500 = vld [vmem:[%s255 + $0x3d8] sm:$0xff]
      %v501 = vld [vmem:[%s255 + $0x3e0] sm:$0xff]
      %v502 = vld [vmem:[%s255 + $0x3e8] sm:$0xff]
      %v503 = vld [vmem:[%s255 + $0x3f0] sm:$0xff]
      %v504 = vld [vmem:[%s255 + $0x3f8] sm:$0xff]
      %v505 = vld [vmem:[%s255 + $0x400] sm:$0xff]
      %v506 = vld [vmem:[%s255 + $0x408] sm:$0xff]
      %v507 = vld [vmem:[%s255 + $0x410] sm:$0xff]
      %v508 = vld [vmem:[%s255 + $0x418] sm:$0xff]
      %v509 = vld [vmem:[%s255 + $0x420] sm:$0xff]
      %v510 = vld [vmem:[%s255 + $0x428] sm:$0xff]
      %v511 = vld [vmem:[%s255 + $0x430] sm:$0xff]
      %v512 = vld [vmem:[%s255 + $0x438] sm:$0xff]
      %v513 = vld [vmem:[%s255 + $0x440] sm:$0xff]
      %v514 = vld [vmem:[%s255 + $0x448] sm:$0xff]
      %v515 = vld [vmem:[%s255 + $0x450] sm:$0xff]
      %v516 = vld [vmem:[%s255 + $0x458] sm:$0xff]
      %v517 = vld [vmem:[%s255 + $0x460] sm:$0xff]
      %v518 = vld [vmem:[%s255 + $0x468] sm:$0xff]
      %v519 = vld [vmem:[%s255 + $0x470] sm:$0xff]
      %v520 = vld [vmem:[%s255 + $0x478] sm:$0xff]
      %v521 = vld [vmem:[%s255 + $0x480] sm:$0xff]
      %v522 = vld [vmem:[%s255 + $0x488] sm:$0xff]
      %v523 = vld [vmem:[%s255 + $0x490] sm:$0xff]
      %v524 = vld [vmem:[%s255 + $0x498] sm:$0xff]
      %v525 = vld [vmem:[%s255 + $0x4a0] sm:$0xff]
      %v526 = vld [vmem:[%s255 + $0x4a8] sm:$0xff]
      %v527 = vld [vmem:[%s255 + $0x4b0] sm:$0xff]
      %v528 = vld [vmem:[%s255 + $0x4b8] sm:$0xff]
      %v529 = vld [vmem:[%s255 + $0x4c0] sm:$0xff]
      %vm530 = vcmask 130048
      %v532 = vsel %vm530, %v379, 0
      %v535 = vsel %vm530, %v382, 0
      %v538 = vsel %vm530, %v385, 0
      %v541 = vsel %vm530, %v388, 0
      %v544 = vsel %vm530, %v391, 0
      %v547 = vsel %vm530, %v394, 0
      %v550 = vsel %vm530, %v397, 0
      %v553 = vsel %vm530, %v400, 0
      %v556 = vsel %vm530, %v403, 0
      %v559 = vsel %vm530, %v406, 0
      %v562 = vsel %vm530, %v409, 0
      %v565 = vsel %vm530, %v412, 0
      %v568 = vsel %vm530, %v415, 0
      %v571 = vsel %vm530, %v418, 0
      %v574 = vsel %vm530, %v421, 0
      %v577 = vsel %vm530, %v424, 0
      %v580 = vsel %vm530, %v427, 0
      %v583 = vsel %vm530, %v430, 0
      %v586 = vsel %vm530, %v433, 0
      %v589 = vsel %vm530, %v436, 0
      %v592 = vsel %vm530, %v439, 0
      %v595 = vsel %vm530, %v442, 0
      %v598 = vsel %vm530, %v445, 0
      %v601 = vsel %vm530, %v448, 0
      %v604 = vsel %vm530, %v451, 0
      %v607 = vsel %vm530, %v454, 0
      %v610 = vsel %vm530, %v457, 0
      %v613 = vsel %vm530, %v460, 0
      %v616 = vsel %vm530, %v463, 0
      %v619 = vsel %vm530, %v466, 0
      %v622 = vsel %vm530, %v469, 0
      %v625 = vsel %vm530, %v472, 0
      %v628 = vsel %vm530, %v475, 0
      %v631 = vsel %vm530, %v478, 0
      %v634 = vsel %vm530, %v481, 0
      %v637 = vsel %vm530, %v484, 0
      %v640 = vsel %vm530, %v487, 0
      %v643 = vsel %vm530, %v490, 0
      %v646 = vsel %vm530, %v493, 0
      %v649 = vsel %vm530, %v496, 0
      %v652 = vsel %vm530, %v499, 0
      %v655 = vsel %vm530, %v502, 0
      %v658 = vsel %vm530, %v505, 0
      %v661 = vsel %vm530, %v508, 0
      %v664 = vsel %vm530, %v511, 0
      %v667 = vsel %vm530, %v514, 0
      %v670 = vsel %vm530, %v517, 0
      %v673 = vsel %vm530, %v520, 0
      %v676 = vsel %vm530, %v523, 0
      %v679 = vsel %vm530, %v526, 0
      %v682 = vsel %vm530, %v529, 0
      %684 = vmatprep.subr.mxu0 0.0
      %685 = vmatpush1.msra.mxu0 %v343
      %686 = vmatprep.subr.mxu0 0.0
      %687 = vmatpush1.msra.mxu0 %v344
      %688 = vmatprep.subr.mxu0 0.0
      %689 = vmatpush1.msra.mxu0 %v345
      %690 = vmatprep.subr.mxu0 0.0
      %691 = vmatpush1.msra.mxu0 %v346
      %692 = vmatprep.subr.mxu0 0.0
      %693 = vmatpush1.msra.mxu0 %v347
      %694 = vmatprep.subr.mxu0 0.0
      %695 = vmatpush1.msra.mxu0 %v348
      %696 = vmatprep.subr.mxu0 0.0
      %697 = vmatpush1.msra.mxu0 %v349
      %698 = vmatprep.subr.mxu0 0.0
      %699 = vmatpush1.msra.mxu0 %v350
      %700 = vmatprep.subr.mxu0 0.0
      %701 = vmatpush1.msra.mxu0 %v351
      %702 = vmatprep.subr.mxu0 0.0
      %703 = vmatpush1.msra.mxu0 %v352
      %704 = vmatprep.subr.mxu0 0.0
      %705 = vmatpush1.msra.mxu0 %v353
      %706 = vmatprep.subr.mxu0 0.0
      %707 = vmatpush1.msra.mxu0 %v354
      %708 = vmatprep.subr.mxu0 0.0
      %709 = vmatpush1.msra.mxu0 %v355
      %710 = vmatprep.subr.mxu0 0.0
      %711 = vmatpush1.msra.mxu0 %v356
      %712 = vmatprep.subr.mxu0 0.0
      %713 = vmatpush1.msra.mxu0 %v357
      %714 = vmatprep.subr.mxu0 0.0
      %715 = vmatpush1.msra.mxu0 %v358
      %716 = vmatprep.subr.mxu0 0.0
      %717 = vmatpush1.msra.mxu0 %v359
      %718 = vmatprep.subr.mxu0 0.0
      %719 = vmatpush1.msra.mxu0 %v360
      %720 = vmatprep.subr.mxu0 0.0
      %721 = vmatpush1.msra.mxu0 %v361
      %722 = vmatprep.subr.mxu0 0.0
      %723 = vmatpush1.msra.mxu0 %v362
      %724 = vmatprep.subr.mxu0 0.0
      %725 = vmatpush1.msra.mxu0 %v363
      %726 = vmatprep.subr.mxu0 0.0
      %727 = vmatpush1.msra.mxu0 %v364
      %728 = vmatprep.subr.mxu0 0.0
      %729 = vmatpush1.msra.mxu0 %v365
      %730 = vmatprep.subr.mxu0 0.0
      %731 = vmatpush1.msra.mxu0 %v366
      %732 = vmatprep.subr.mxu0 0.0
      %733 = vmatpush1.msra.mxu0 %v367
      %734 = vmatprep.subr.mxu0 0.0
      %735 = vmatpush1.msra.mxu0 %v368
      %736 = vmatprep.subr.mxu0 0.0
      %737 = vmatpush1.msra.mxu0 %v369
      %738 = vmatprep.subr.mxu0 0.0
      %739 = vmatpush1.msra.mxu0 %v370
      %740 = vmatprep.subr.mxu0 0.0
      %741 = vmatpush1.msra.mxu0 %v371
      %742 = vmatprep.subr.mxu0 0.0
      %743 = vmatpush1.msra.mxu0 %v372
      %744 = vmatprep.subr.mxu0 0.0
      %745 = vmatpush1.msra.mxu0 %v373
      %746 = vmatprep.subr.mxu0 0.0
      %747 = vmatpush1.msra.mxu0 %v374
      %748 = vmatprep.mubr.f32.mxu0 %v378
      %749 = vmatmul.mubr.f32.gmra.mrb[0].mxu0 %v377
      %v750 = vpop.f32.mrb[0].mxu0
      %v751 = vadd.f32 0.0, %v750
      %v752 = vpop.f32.mrb[0].mxu0
      %753 = vmatprep.mubr.f32.mxu0 %v381
      %754 = vmatmul.mubr.f32.gmra.mrb[0].mxu0 %v380
      %v755 = vpop.f32.mrb[0].mxu0
      %v756 = vadd.f32 0.0, %v755
      %v757 = vpop.f32.mrb[0].mxu0
      %758 = vmatprep.mubr.f32.mxu0 %v384
      %759 = vmatmul.mubr.f32.gmra.mrb[0].mxu0 %v383
      %v760 = vpop.f32.mrb[0].mxu0
      %v761 = vadd.f32 0.0, %v760
      %v762 = vpop.f32.mrb[0].mxu0
      %763 = vmatprep.mubr.f32.mxu0 %v387
      %764 = vmatmul.mubr.f32.gmra.mrb[0].mxu0 %v386
      %v765 = vpop.f32.mrb[0].mxu0
      %v766 = vadd.f32 0.0, %v765
      %v767 = vpop.f32.mrb[0].mxu0
      %768 = vmatprep.mubr.f32.mxu0 %v390
      %769 = vmatmul.mubr.f32.gmra.mrb[0].mxu0 %v389
      %v770 = vpop.f32.mrb[0].mxu0
      %v771 = vadd.f32 0.0, %v770
      %v772 = vpop.f32.mrb[0].mxu0
      %773 = vmatprep.mubr.f32.mxu0 %v393
      %774 = vmatmul.mubr.f32.gmra.mrb[0].mxu0 %v392
      %v775 = vpop.f32.mrb[0].mxu0
      %v776 = vadd.f32 0.0, %v775
      %v777 = vpop.f32.mrb[0].mxu0
      %778 = vmatprep.mubr.f32.mxu0 %v396
      %779 = vmatmul.mubr.f32.gmra.mrb[0].mxu0 %v395
      %v780 = vpop.f32.mrb[0].mxu0
      %v781 = vadd.f32 0.0, %v780
      %v782 = vpop.f32.mrb[0].mxu0
      %783 = vmatprep.mubr.f32.mxu0 %v399
      %784 = vmatmul.mubr.f32.gmra.mrb[0].mxu0 %v398
      %v785 = vpop.f32.mrb[0].mxu0
      %v786 = vadd.f32 0.0, %v785
      %v787 = vpop.f32.mrb[0].mxu0
      %788 = vmatprep.mubr.f32.mxu0 %v402
      %789 = vmatmul.mubr.f32.gmra.mrb[0].mxu0 %v401
      %v790 = vpop.f32.mrb[0].mxu0
      %v791 = vadd.f32 0.0, %v790
      %v792 = vpop.f32.mrb[0].mxu0
      %793 = vmatprep.mubr.f32.mxu0 %v405
      %794 = vmatmul.mubr.f32.gmra.mrb[0].mxu0 %v404
      %v795 = vpop.f32.mrb[0].mxu0
      %v796 = vadd.f32 0.0, %v795
      %v797 = vpop.f32.mrb[0].mxu0
      %798 = vmatprep.mubr.f32.mxu0 %v408
      %799 = vmatmul.mubr.f32.gmra.mrb[0].mxu0 %v407
      %v800 = vpop.f32.mrb[0].mxu0
      %v801 = vadd.f32 0.0, %v800
      %v802 = vpop.f32.mrb[0].mxu0
      %803 = vmatprep.mubr.f32.mxu0 %v411
      %804 = vmatmul.mubr.f32.gmra.mrb[0].mxu0 %v410
      %v805 = vpop.f32.mrb[0].mxu0
      %v806 = vadd.f32 0.0, %v805
      %v807 = vpop.f32.mrb[0].mxu0
      %808 = vmatprep.mubr.f32.mxu0 %v414
      %809 = vmatmul.mubr.f32.gmra.mrb[0].mxu0 %v413
      %v810 = vpop.f32.mrb[0].mxu0
      %v811 = vadd.f32 0.0, %v810
      %v812 = vpop.f32.mrb[0].mxu0
      %813 = vmatprep.mubr.f32.mxu0 %v417
      %814 = vmatmul.mubr.f32.gmra.mrb[0].mxu0 %v416
      %v815 = vpop.f32.mrb[0].mxu0
      %v816 = vadd.f32 0.0, %v815
      %v817 = vpop.f32.mrb[0].mxu0
      %818 = vmatprep.mubr.f32.mxu0 %v420
      %819 = vmatmul.mubr.f32.gmra.mrb[0].mxu0 %v419
      %v820 = vpop.f32.mrb[0].mxu0
      %v821 = vadd.f32 0.0, %v820
      %v822 = vpop.f32.mrb[0].mxu0
      %823 = vmatprep.mubr.f32.mxu0 %v423
      %824 = vmatmul.mubr.f32.gmra.mrb[0].mxu0 %v422
      %v825 = vpop.f32.mrb[0].mxu0
      %v826 = vadd.f32 0.0, %v825
      %v827 = vpop.f32.mrb[0].mxu0
      %828 = vmatprep.mubr.f32.mxu0 %v426
      %829 = vmatmul.mubr.f32.gmra.mrb[0].mxu0 %v425
      %v830 = vpop.f32.mrb[0].mxu0
      %v831 = vadd.f32 0.0, %v830
      %v832 = vpop.f32.mrb[0].mxu0
      %833 = vmatprep.mubr.f32.mxu0 %v429
      %834 = vmatmul.mubr.f32.gmra.mrb[0].mxu0 %v428
      %v835 = vpop.f32.mrb[0].mxu0
      %v836 = vadd.f32 0.0, %v835
      %v837 = vpop.f32.mrb[0].mxu0
      %838 = vmatprep.mubr.f32.mxu0 %v432
      %839 = vmatmul.mubr.f32.gmra.mrb[0].mxu0 %v431
      %v840 = vpop.f32.mrb[0].mxu0
      %v841 = vadd.f32 0.0, %v840
      %v842 = vpop.f32.mrb[0].mxu0
      %843 = vmatprep.mubr.f32.mxu0 %v435
      %844 = vmatmul.mubr.f32.gmra.mrb[0].mxu0 %v434
      %v845 = vpop.f32.mrb[0].mxu0
      %v846 = vadd.f32 0.0, %v845
      %v847 = vpop.f32.mrb[0].mxu0
      %848 = vmatprep.mubr.f32.mxu0 %v438
      %849 = vmatmul.mubr.f32.gmra.mrb[0].mxu0 %v437
      %v850 = vpop.f32.mrb[0].mxu0
      %v851 = vadd.f32 0.0, %v850
      %v852 = vpop.f32.mrb[0].mxu0
      %853 = vmatprep.mubr.f32.mxu0 %v441
      %854 = vmatmul.mubr.f32.gmra.mrb[0].mxu0 %v440
      %v855 = vpop.f32.mrb[0].mxu0
      %v856 = vadd.f32 0.0, %v855
      %v857 = vpop.f32.mrb[0].mxu0
      %858 = vmatprep.mubr.f32.mxu0 %v444
      %859 = vmatmul.mubr.f32.gmra.mrb[0].mxu0 %v443
      %v860 = vpop.f32.mrb[0].mxu0
      %v861 = vadd.f32 0.0, %v860
      %v862 = vpop.f32.mrb[0].mxu0
      %863 = vmatprep.mubr.f32.mxu0 %v447
      %864 = vmatmul.mubr.f32.gmra.mrb[0].mxu0 %v446
      %v865 = vpop.f32.mrb[0].mxu0
      %v866 = vadd.f32 0.0, %v865
      %v867 = vpop.f32.mrb[0].mxu0
      %868 = vmatprep.mubr.f32.mxu0 %v450
      %869 = vmatmul.mubr.f32.gmra.mrb[0].mxu0 %v449
      %v870 = vpop.f32.mrb[0].mxu0
      %v871 = vadd.f32 0.0, %v870
      %v872 = vpop.f32.mrb[0].mxu0
      %873 = vmatprep.mubr.f32.mxu0 %v453
      %874 = vmatmul.mubr.f32.gmra.mrb[0].mxu0 %v452
      %v875 = vpop.f32.mrb[0].mxu0
      %v876 = vadd.f32 0.0, %v875
      %v877 = vpop.f32.mrb[0].mxu0
      %878 = vmatprep.mubr.f32.mxu0 %v456
      %879 = vmatmul.mubr.f32.gmra.mrb[0].mxu0 %v455
      %v880 = vpop.f32.mrb[0].mxu0
      %v881 = vadd.f32 0.0, %v880
      %v882 = vpop.f32.mrb[0].mxu0
      %883 = vmatprep.mubr.f32.mxu0 %v459
      %884 = vmatmul.mubr.f32.gmra.mrb[0].mxu0 %v458
      %v885 = vpop.f32.mrb[0].mxu0
      %v886 = vadd.f32 0.0, %v885
      %v887 = vpop.f32.mrb[0].mxu0
      %888 = vmatprep.mubr.f32.mxu0 %v462
      %889 = vmatmul.mubr.f32.gmra.mrb[0].mxu0 %v461
      %v890 = vpop.f32.mrb[0].mxu0
      %v891 = vadd.f32 0.0, %v890
      %v892 = vpop.f32.mrb[0].mxu0
      %893 = vmatprep.mubr.f32.mxu0 %v465
      %894 = vmatmul.mubr.f32.gmra.mrb[0].mxu0 %v464
      %v895 = vpop.f32.mrb[0].mxu0
      %v896 = vadd.f32 0.0, %v895
      %v897 = vpop.f32.mrb[0].mxu0
      %898 = vmatprep.mubr.f32.mxu0 %v468
      %899 = vmatmul.mubr.f32.gmra.mrb[0].mxu0 %v467
      %v900 = vpop.f32.mrb[0].mxu0
      %v901 = vadd.f32 0.0, %v900
      %v902 = vpop.f32.mrb[0].mxu0
      %903 = vmatprep.mubr.f32.mxu0 %v471
      %904 = vmatmul.mubr.f32.gmra.mrb[0].mxu0 %v470
      %v905 = vpop.f32.mrb[0].mxu0
      %v906 = vadd.f32 0.0, %v905
      %v907 = vpop.f32.mrb[0].mxu0
      %908 = vmatprep.mubr.f32.mxu0 %v474
      %909 = vmatmul.mubr.f32.gmra.mrb[0].mxu0 %v473
      %v910 = vpop.f32.mrb[0].mxu0
      %v911 = vadd.f32 0.0, %v910
      %v912 = vpop.f32.mrb[0].mxu0
      %913 = vmatprep.mubr.f32.mxu0 %v477
      %914 = vmatmul.mubr.f32.gmra.mrb[0].mxu0 %v476
      %v915 = vpop.f32.mrb[0].mxu0
      %v916 = vadd.f32 0.0, %v915
      %v917 = vpop.f32.mrb[0].mxu0
      %918 = vmatprep.mubr.f32.mxu0 %v480
      %919 = vmatmul.mubr.f32.gmra.mrb[0].mxu0 %v479
      %v920 = vpop.f32.mrb[0].mxu0
      %v921 = vadd.f32 0.0, %v920
      %v922 = vpop.f32.mrb[0].mxu0
      %923 = vmatprep.mubr.f32.mxu0 %v483
      %924 = vmatmul.mubr.f32.gmra.mrb[0].mxu0 %v482
      %v925 = vpop.f32.mrb[0].mxu0
      %v926 = vadd.f32 0.0, %v925
      %v927 = vpop.f32.mrb[0].mxu0
      %928 = vmatprep.mubr.f32.mxu0 %v486
      %929 = vmatmul.mubr.f32.gmra.mrb[0].mxu0 %v485
      %v930 = vpop.f32.mrb[0].mxu0
      %v931 = vadd.f32 0.0, %v930
      %v932 = vpop.f32.mrb[0].mxu0
      %933 = vmatprep.mubr.f32.mxu0 %v489
      %934 = vmatmul.mubr.f32.gmra.mrb[0].mxu0 %v488
      %v935 = vpop.f32.mrb[0].mxu0
      %v936 = vadd.f32 0.0, %v935
      %v937 = vpop.f32.mrb[0].mxu0
      %938 = vmatprep.mubr.f32.mxu0 %v492
      %939 = vmatmul.mubr.f32.gmra.mrb[0].mxu0 %v491
      %v940 = vpop.f32.mrb[0].mxu0
      %v941 = vadd.f32 0.0, %v940
      %v942 = vpop.f32.mrb[0].mxu0
      %943 = vmatprep.mubr.f32.mxu0 %v495
      %944 = vmatmul.mubr.f32.gmra.mrb[0].mxu0 %v494
      %v945 = vpop.f32.mrb[0].mxu0
      %v946 = vadd.f32 0.0, %v945
      %v947 = vpop.f32.mrb[0].mxu0
      %948 = vmatprep.mubr.f32.mxu0 %v498
      %949 = vmatmul.mubr.f32.gmra.mrb[0].mxu0 %v497
      %v950 = vpop.f32.mrb[0].mxu0
      %v951 = vadd.f32 0.0, %v950
      %v952 = vpop.f32.mrb[0].mxu0
      %953 = vmatprep.mubr.f32.mxu0 %v501
      %954 = vmatmul.mubr.f32.gmra.mrb[0].mxu0 %v500
      %v955 = vpop.f32.mrb[0].mxu0
      %v956 = vadd.f32 0.0, %v955
      %v957 = vpop.f32.mrb[0].mxu0
      %958 = vmatprep.mubr.f32.mxu0 %v504
      %959 = vmatmul.mubr.f32.gmra.mrb[0].mxu0 %v503
      %v960 = vpop.f32.mrb[0].mxu0
      %v961 = vadd.f32 0.0, %v960
      %v962 = vpop.f32.mrb[0].mxu0
      %963 = vmatprep.mubr.f32.mxu0 %v507
      %964 = vmatmul.mubr.f32.gmra.mrb[0].mxu0 %v506
      %v965 = vpop.f32.mrb[0].mxu0
      %v966 = vadd.f32 0.0, %v965
      %v967 = vpop.f32.mrb[0].mxu0
      %968 = vmatprep.mubr.f32.mxu0 %v510
      %969 = vmatmul.mubr.f32.gmra.mrb[0].mxu0 %v509
      %v970 = vpop.f32.mrb[0].mxu0
      %v971 = vadd.f32 0.0, %v970
      %v972 = vpop.f32.mrb[0].mxu0
      %973 = vmatprep.mubr.f32.mxu0 %v513
      %974 = vmatmul.mubr.f32.gmra.mrb[0].mxu0 %v512
      %v975 = vpop.f32.mrb[0].mxu0
      %v976 = vadd.f32 0.0, %v975
      %v977 = vpop.f32.mrb[0].mxu0
      %978 = vmatprep.mubr.f32.mxu0 %v516
      %979 = vmatmul.mubr.f32.gmra.mrb[0].mxu0 %v515
      %v980 = vpop.f32.mrb[0].mxu0
      %v981 = vadd.f32 0.0, %v980
      %v982 = vpop.f32.mrb[0].mxu0
      %983 = vmatprep.mubr.f32.mxu0 %v519
      %984 = vmatmul.mubr.f32.gmra.mrb[0].mxu0 %v518
      %v985 = vpop.f32.mrb[0].mxu0
      %v986 = vadd.f32 0.0, %v985
      %v987 = vpop.f32.mrb[0].mxu0
      %988 = vmatprep.mubr.f32.mxu0 %v522
      %989 = vmatmul.mubr.f32.gmra.mrb[0].mxu0 %v521
      %v990 = vpop.f32.mrb[0].mxu0
      %v991 = vadd.f32 0.0, %v990
      %v992 = vpop.f32.mrb[0].mxu0
      %993 = vmatprep.mubr.f32.mxu0 %v525
      %994 = vmatmul.mubr.f32.gmra.mrb[0].mxu0 %v524
      %v995 = vpop.f32.mrb[0].mxu0
      %v996 = vadd.f32 0.0, %v995
      %v997 = vpop.f32.mrb[0].mxu0
      %998 = vmatprep.mubr.f32.mxu0 %v528
      %999 = vmatmul.mubr.f32.gmra.mrb[0].mxu0 %v527
      %v1000 = vpop.f32.mrb[0].mxu0
      %v1001 = vadd.f32 0.0, %v1000
      %v1002 = vpop.f32.mrb[0].mxu0
      %1003 = vdwg.mxu0
      %1004 = vmatprep.subr.mxu0 0.0
      %1005 = vmatpush1.msra.mxu0 %v375
      %1006 = vmatprep.subr.mxu0 0.0
      %1007 = vmatpush1.msra.mxu0 %v376
      %1008 = vmatprep.subr.mxu0 0.0
      %1009 = vmatpush1.msra.mxu0 0.0
      %1010 = vmatprep.subr.mxu0 0.0
      %1011 = vmatpush1.msra.mxu0 0.0
      %1012 = vmatprep.subr.mxu0 0.0
      %1013 = vmatpush1.msra.mxu0 0.0
      %1014 = vmatprep.subr.mxu0 0.0
      %1015 = vmatpush1.msra.mxu0 0.0
      %1016 = vmatprep.subr.mxu0 0.0
      %1017 = vmatpush1.msra.mxu0 0.0
      %1018 = vmatprep.subr.mxu0 0.0
      %1019 = vmatpush1.msra.mxu0 0.0
      %1020 = vmatprep.subr.mxu0 0.0
      %1021 = vmatpush1.msra.mxu0 0.0
      %1022 = vmatprep.subr.mxu0 0.0
      %1023 = vmatpush1.msra.mxu0 0.0
      %1024 = vmatprep.subr.mxu0 0.0
      %1025 = vmatpush1.msra.mxu0 0.0
      %1026 = vmatprep.subr.mxu0 0.0
      %1027 = vmatpush1.msra.mxu0 0.0
      %1028 = vmatprep.subr.mxu0 0.0
      %1029 = vmatpush1.msra.mxu0 0.0
      %1030 = vmatprep.subr.mxu0 0.0
      %1031 = vmatpush1.msra.mxu0 0.0
      %1032 = vmatprep.subr.mxu0 0.0
      %1033 = vmatpush1.msra.mxu0 0.0
      %1034 = vmatprep.subr.mxu0 0.0
      %1035 = vmatpush1.msra.mxu0 0.0
      %1036 = vmatprep.subr.mxu0 0.0
      %1037 = vmatpush1.msra.mxu0 0.0
      %1038 = vmatprep.subr.mxu0 0.0
      %1039 = vmatpush1.msra.mxu0 0.0
      %1040 = vmatprep.subr.mxu0 0.0
      %1041 = vmatpush1.msra.mxu0 0.0
      %1042 = vmatprep.subr.mxu0 0.0
      %1043 = vmatpush1.msra.mxu0 0.0
      %1044 = vmatprep.subr.mxu0 0.0
      %1045 = vmatpush1.msra.mxu0 0.0
      %1046 = vmatprep.subr.mxu0 0.0
      %1047 = vmatpush1.msra.mxu0 0.0
      %1048 = vmatprep.subr.mxu0 0.0
      %1049 = vmatpush1.msra.mxu0 0.0
      %1050 = vmatprep.subr.mxu0 0.0
      %1051 = vmatpush1.msra.mxu0 0.0
      %1052 = vmatprep.subr.mxu0 0.0
      %1053 = vmatpush1.msra.mxu0 0.0
      %1054 = vmatprep.subr.mxu0 0.0
      %1055 = vmatpush1.msra.mxu0 0.0
      %1056 = vmatprep.subr.mxu0 0.0
      %1057 = vmatpush1.msra.mxu0 0.0
      %1058 = vmatprep.subr.mxu0 0.0
      %1059 = vmatpush1.msra.mxu0 0.0
      %1060 = vmatprep.subr.mxu0 0.0
      %1061 = vmatpush1.msra.mxu0 0.0
      %1062 = vmatprep.subr.mxu0 0.0
      %1063 = vmatpush1.msra.mxu0 0.0
      %1064 = vmatprep.subr.mxu0 0.0
      %1065 = vmatpush1.msra.mxu0 0.0
      %1066 = vmatprep.subr.mxu0 0.0
      %1067 = vmatpush1.msra.mxu0 0.0
      %1068 = vmatprep.mubr.f32.mxu0 0.0
      %1069 = vmatmul.mubr.f32.gmra.mrb[0].mxu0 %v532
      %v1070 = vpop.f32.mrb[0].mxu0
      %v1071 = vadd.f32 %v751, %v1070
      %v1072 = vpop.f32.mrb[0].mxu0
      %1073 = vmatprep.mubr.f32.mxu0 0.0
      %1074 = vmatmul.mubr.f32.gmra.mrb[0].mxu0 %v535
      %v1075 = vpop.f32.mrb[0].mxu0
      %v1076 = vadd.f32 %v756, %v1075
      %v1077 = vpop.f32.mrb[0].mxu0
      %1078 = vmatprep.mubr.f32.mxu0 0.0
      %1079 = vmatmul.mubr.f32.gmra.mrb[0].mxu0 %v538
      %v1080 = vpop.f32.mrb[0].mxu0
      %v1081 = vadd.f32 %v761, %v1080
      %v1082 = vpop.f32.mrb[0].mxu0
      %1083 = vmatprep.mubr.f32.mxu0 0.0
      %1084 = vmatmul.mubr.f32.gmra.mrb[0].mxu0 %v541
      %v1085 = vpop.f32.mrb[0].mxu0
      %v1086 = vadd.f32 %v766, %v1085
      %v1087 = vpop.f32.mrb[0].mxu0
      %1088 = vmatprep.mubr.f32.mxu0 0.0
      %1089 = vmatmul.mubr.f32.gmra.mrb[0].mxu0 %v544
      %v1090 = vpop.f32.mrb[0].mxu0
      %v1091 = vadd.f32 %v771, %v1090
      %v1092 = vpop.f32.mrb[0].mxu0
      %1093 = vmatprep.mubr.f32.mxu0 0.0
      %1094 = vmatmul.mubr.f32.gmra.mrb[0].mxu0 %v547
      %v1095 = vpop.f32.mrb[0].mxu0
      %v1096 = vadd.f32 %v776, %v1095
      %v1097 = vpop.f32.mrb[0].mxu0
      %1098 = vmatprep.mubr.f32.mxu0 0.0
      %1099 = vmatmul.mubr.f32.gmra.mrb[0].mxu0 %v550
      %v1100 = vpop.f32.mrb[0].mxu0
      %v1101 = vadd.f32 %v781, %v1100
      %v1102 = vpop.f32.mrb[0].mxu0
      %1103 = vmatprep.mubr.f32.mxu0 0.0
      %1104 = vmatmul.mubr.f32.gmra.mrb[0].mxu0 %v553
      %v1105 = vpop.f32.mrb[0].mxu0
      %v1106 = vadd.f32 %v786, %v1105
      %v1107 = vpop.f32.mrb[0].mxu0
      %1108 = vmatprep.mubr.f32.mxu0 0.0
      %1109 = vmatmul.mubr.f32.gmra.mrb[0].mxu0 %v556
      %v1110 = vpop.f32.mrb[0].mxu0
      %v1111 = vadd.f32 %v791, %v1110
      %v1112 = vpop.f32.mrb[0].mxu0
      %1113 = vmatprep.mubr.f32.mxu0 0.0
      %1114 = vmatmul.mubr.f32.gmra.mrb[0].mxu0 %v559
      %v1115 = vpop.f32.mrb[0].mxu0
      %v1116 = vadd.f32 %v796, %v1115
      %v1117 = vpop.f32.mrb[0].mxu0
      %1118 = vmatprep.mubr.f32.mxu0 0.0
      %1119 = vmatmul.mubr.f32.gmra.mrb[0].mxu0 %v562
      %v1120 = vpop.f32.mrb[0].mxu0
      %v1121 = vadd.f32 %v801, %v1120
      %v1122 = vpop.f32.mrb[0].mxu0
      %1123 = vmatprep.mubr.f32.mxu0 0.0
      %1124 = vmatmul.mubr.f32.gmra.mrb[0].mxu0 %v565
      %v1125 = vpop.f32.mrb[0].mxu0
      %v1126 = vadd.f32 %v806, %v1125
      %v1127 = vpop.f32.mrb[0].mxu0
      %1128 = vmatprep.mubr.f32.mxu0 0.0
      %1129 = vmatmul.mubr.f32.gmra.mrb[0].mxu0 %v568
      %v1130 = vpop.f32.mrb[0].mxu0
      %v1131 = vadd.f32 %v811, %v1130
      %v1132 = vpop.f32.mrb[0].mxu0
      %1133 = vmatprep.mubr.f32.mxu0 0.0
      %1134 = vmatmul.mubr.f32.gmra.mrb[0].mxu0 %v571
      %v1135 = vpop.f32.mrb[0].mxu0
      %v1136 = vadd.f32 %v816, %v1135
      %v1137 = vpop.f32.mrb[0].mxu0
      %1138 = vmatprep.mubr.f32.mxu0 0.0
      %1139 = vmatmul.mubr.f32.gmra.mrb[0].mxu0 %v574
      %v1140 = vpop.f32.mrb[0].mxu0
      %v1141 = vadd.f32 %v821, %v1140
      %v1142 = vpop.f32.mrb[0].mxu0
      %1143 = vmatprep.mubr.f32.mxu0 0.0
      %1144 = vmatmul.mubr.f32.gmra.mrb[0].mxu0 %v577
      %v1145 = vpop.f32.mrb[0].mxu0
      %v1146 = vadd.f32 %v826, %v1145
      %v1147 = vpop.f32.mrb[0].mxu0
      %1148 = vmatprep.mubr.f32.mxu0 0.0
      %1149 = vmatmul.mubr.f32.gmra.mrb[0].mxu0 %v580
      %v1150 = vpop.f32.mrb[0].mxu0
      %v1151 = vadd.f32 %v831, %v1150
      %v1152 = vpop.f32.mrb[0].mxu0
      %1153 = vmatprep.mubr.f32.mxu0 0.0
      %1154 = vmatmul.mubr.f32.gmra.mrb[0].mxu0 %v583
      %v1155 = vpop.f32.mrb[0].mxu0
      %v1156 = vadd.f32 %v836, %v1155
      %v1157 = vpop.f32.mrb[0].mxu0
      %1158 = vmatprep.mubr.f32.mxu0 0.0
      %1159 = vmatmul.mubr.f32.gmra.mrb[0].mxu0 %v586
      %v1160 = vpop.f32.mrb[0].mxu0
      %v1161 = vadd.f32 %v841, %v1160
      %v1162 = vpop.f32.mrb[0].mxu0
      %1163 = vmatprep.mubr.f32.mxu0 0.0
      %1164 = vmatmul.mubr.f32.gmra.mrb[0].mxu0 %v589
      %v1165 = vpop.f32.mrb[0].mxu0
      %v1166 = vadd.f32 %v846, %v1165
      %v1167 = vpop.f32.mrb[0].mxu0
      %1168 = vmatprep.mubr.f32.mxu0 0.0
      %1169 = vmatmul.mubr.f32.gmra.mrb[0].mxu0 %v592
      %v1170 = vpop.f32.mrb[0].mxu0
      %v1171 = vadd.f32 %v851, %v1170
      %v1172 = vpop.f32.mrb[0].mxu0
      %1173 = vmatprep.mubr.f32.mxu0 0.0
      %1174 = vmatmul.mubr.f32.gmra.mrb[0].mxu0 %v595
      %v1175 = vpop.f32.mrb[0].mxu0
      %v1176 = vadd.f32 %v856, %v1175
      %v1177 = vpop.f32.mrb[0].mxu0
      %1178 = vmatprep.mubr.f32.mxu0 0.0
      %1179 = vmatmul.mubr.f32.gmra.mrb[0].mxu0 %v598
      %v1180 = vpop.f32.mrb[0].mxu0
      %v1181 = vadd.f32 %v861, %v1180
      %v1182 = vpop.f32.mrb[0].mxu0
      %1183 = vmatprep.mubr.f32.mxu0 0.0
      %1184 = vmatmul.mubr.f32.gmra.mrb[0].mxu0 %v601
      %v1185 = vpop.f32.mrb[0].mxu0
      %v1186 = vadd.f32 %v866, %v1185
      %v1187 = vpop.f32.mrb[0].mxu0
      %1188 = vmatprep.mubr.f32.mxu0 0.0
      %1189 = vmatmul.mubr.f32.gmra.mrb[0].mxu0 %v604
      %v1190 = vpop.f32.mrb[0].mxu0
      %v1191 = vadd.f32 %v871, %v1190
      %v1192 = vpop.f32.mrb[0].mxu0
      %1193 = vmatprep.mubr.f32.mxu0 0.0
      %1194 = vmatmul.mubr.f32.gmra.mrb[0].mxu0 %v607
      %v1195 = vpop.f32.mrb[0].mxu0
      %v1196 = vadd.f32 %v876, %v1195
      %v1197 = vpop.f32.mrb[0].mxu0
      %1198 = vmatprep.mubr.f32.mxu0 0.0
      %1199 = vmatmul.mubr.f32.gmra.mrb[0].mxu0 %v610
      %v1200 = vpop.f32.mrb[0].mxu0
      %v1201 = vadd.f32 %v881, %v1200
      %v1202 = vpop.f32.mrb[0].mxu0
      %1203 = vmatprep.mubr.f32.mxu0 0.0
      %1204 = vmatmul.mubr.f32.gmra.mrb[0].mxu0 %v613
      %v1205 = vpop.f32.mrb[0].mxu0
      %v1206 = vadd.f32 %v886, %v1205
      %v1207 = vpop.f32.mrb[0].mxu0
      %1208 = vmatprep.mubr.f32.mxu0 0.0
      %1209 = vmatmul.mubr.f32.gmra.mrb[0].mxu0 %v616
      %v1210 = vpop.f32.mrb[0].mxu0
      %v1211 = vadd.f32 %v891, %v1210
      %v1212 = vpop.f32.mrb[0].mxu0
      %1213 = vmatprep.mubr.f32.mxu0 0.0
      %1214 = vmatmul.mubr.f32.gmra.mrb[0].mxu0 %v619
      %v1215 = vpop.f32.mrb[0].mxu0
      %v1216 = vadd.f32 %v896, %v1215
      %v1217 = vpop.f32.mrb[0].mxu0
      %1218 = vmatprep.mubr.f32.mxu0 0.0
      %1219 = vmatmul.mubr.f32.gmra.mrb[0].mxu0 %v622
      %v1220 = vpop.f32.mrb[0].mxu0
      %v1221 = vadd.f32 %v901, %v1220
      %v1222 = vpop.f32.mrb[0].mxu0
      %1223 = vmatprep.mubr.f32.mxu0 0.0
      %1224 = vmatmul.mubr.f32.gmra.mrb[0].mxu0 %v625
      %v1225 = vpop.f32.mrb[0].mxu0
      %v1226 = vadd.f32 %v906, %v1225
      %v1227 = vpop.f32.mrb[0].mxu0
      %1228 = vmatprep.mubr.f32.mxu0 0.0
      %1229 = vmatmul.mubr.f32.gmra.mrb[0].mxu0 %v628
      %v1230 = vpop.f32.mrb[0].mxu0
      %v1231 = vadd.f32 %v911, %v1230
      %v1232 = vpop.f32.mrb[0].mxu0
      %1233 = vmatprep.mubr.f32.mxu0 0.0
      %1234 = vmatmul.mubr.f32.gmra.mrb[0].mxu0 %v631
      %v1235 = vpop.f32.mrb[0].mxu0
      %v1236 = vadd.f32 %v916, %v1235
      %v1237 = vpop.f32.mrb[0].mxu0
      %1238 = vmatprep.mubr.f32.mxu0 0.0
      %1239 = vmatmul.mubr.f32.gmra.mrb[0].mxu0 %v634
      %v1240 = vpop.f32.mrb[0].mxu0
      %v1241 = vadd.f32 %v921, %v1240
      %v1242 = vpop.f32.mrb[0].mxu0
      %1243 = vmatprep.mubr.f32.mxu0 0.0
      %1244 = vmatmul.mubr.f32.gmra.mrb[0].mxu0 %v637
      %v1245 = vpop.f32.mrb[0].mxu0
      %v1246 = vadd.f32 %v926, %v1245
      %v1247 = vpop.f32.mrb[0].mxu0
      %1248 = vmatprep.mubr.f32.mxu0 0.0
      %1249 = vmatmul.mubr.f32.gmra.mrb[0].mxu0 %v640
      %v1250 = vpop.f32.mrb[0].mxu0
      %v1251 = vadd.f32 %v931, %v1250
      %v1252 = vpop.f32.mrb[0].mxu0
      %1253 = vmatprep.mubr.f32.mxu0 0.0
      %1254 = vmatmul.mubr.f32.gmra.mrb[0].mxu0 %v643
      %v1255 = vpop.f32.mrb[0].mxu0
      %v1256 = vadd.f32 %v936, %v1255
      %v1257 = vpop.f32.mrb[0].mxu0
      %1258 = vmatprep.mubr.f32.mxu0 0.0
      %1259 = vmatmul.mubr.f32.gmra.mrb[0].mxu0 %v646
      %v1260 = vpop.f32.mrb[0].mxu0
      %v1261 = vadd.f32 %v941, %v1260
      %v1262 = vpop.f32.mrb[0].mxu0
      %1263 = vmatprep.mubr.f32.mxu0 0.0
      %1264 = vmatmul.mubr.f32.gmra.mrb[0].mxu0 %v649
      %v1265 = vpop.f32.mrb[0].mxu0
      %v1266 = vadd.f32 %v946, %v1265
      %v1267 = vpop.f32.mrb[0].mxu0
      %1268 = vmatprep.mubr.f32.mxu0 0.0
      %1269 = vmatmul.mubr.f32.gmra.mrb[0].mxu0 %v652
      %v1270 = vpop.f32.mrb[0].mxu0
      %v1271 = vadd.f32 %v951, %v1270
      %v1272 = vpop.f32.mrb[0].mxu0
      %1273 = vmatprep.mubr.f32.mxu0 0.0
      %1274 = vmatmul.mubr.f32.gmra.mrb[0].mxu0 %v655
      %v1275 = vpop.f32.mrb[0].mxu0
      %v1276 = vadd.f32 %v956, %v1275
      %v1277 = vpop.f32.mrb[0].mxu0
      %1278 = vmatprep.mubr.f32.mxu0 0.0
      %1279 = vmatmul.mubr.f32.gmra.mrb[0].mxu0 %v658
      %v1280 = vpop.f32.mrb[0].mxu0
      %v1281 = vadd.f32 %v961, %v1280
      %v1282 = vpop.f32.mrb[0].mxu0
      %1283 = vmatprep.mubr.f32.mxu0 0.0
      %1284 = vmatmul.mubr.f32.gmra.mrb[0].mxu0 %v661
      %v1285 = vpop.f32.mrb[0].mxu0
      %v1286 = vadd.f32 %v966, %v1285
      %v1287 = vpop.f32.mrb[0].mxu0
      %1288 = vmatprep.mubr.f32.mxu0 0.0
      %1289 = vmatmul.mubr.f32.gmra.mrb[0].mxu0 %v664
      %v1290 = vpop.f32.mrb[0].mxu0
      %v1291 = vadd.f32 %v971, %v1290
      %v1292 = vpop.f32.mrb[0].mxu0
      %1293 = vmatprep.mubr.f32.mxu0 0.0
      %1294 = vmatmul.mubr.f32.gmra.mrb[0].mxu0 %v667
      %v1295 = vpop.f32.mrb[0].mxu0
      %v1296 = vadd.f32 %v976, %v1295
      %v1297 = vpop.f32.mrb[0].mxu0
      %1298 = vmatprep.mubr.f32.mxu0 0.0
      %1299 = vmatmul.mubr.f32.gmra.mrb[0].mxu0 %v670
      %v1300 = vpop.f32.mrb[0].mxu0
      %v1301 = vadd.f32 %v981, %v1300
      %v1302 = vpop.f32.mrb[0].mxu0
      %1303 = vmatprep.mubr.f32.mxu0 0.0
      %1304 = vmatmul.mubr.f32.gmra.mrb[0].mxu0 %v673
      %v1305 = vpop.f32.mrb[0].mxu0
      %v1306 = vadd.f32 %v986, %v1305
      %v1307 = vpop.f32.mrb[0].mxu0
      %1308 = vmatprep.mubr.f32.mxu0 0.0
      %1309 = vmatmul.mubr.f32.gmra.mrb[0].mxu0 %v676
      %v1310 = vpop.f32.mrb[0].mxu0
      %v1311 = vadd.f32 %v991, %v1310
      %v1312 = vpop.f32.mrb[0].mxu0
      %1313 = vmatprep.mubr.f32.mxu0 0.0
      %1314 = vmatmul.mubr.f32.gmra.mrb[0].mxu0 %v679
      %v1315 = vpop.f32.mrb[0].mxu0
      %v1316 = vadd.f32 %v996, %v1315
      %v1317 = vpop.f32.mrb[0].mxu0
      %1318 = vmatprep.mubr.f32.mxu0 0.0
      %1319 = vmatmul.mubr.f32.gmra.mrb[0].mxu0 %v682
      %v1320 = vpop.f32.mrb[0].mxu0
      %v1321 = vadd.f32 %v1001, %v1320
      %v1322 = vpop.f32.mrb[0].mxu0
      %1323 = vdwg.mxu0
      %vm1324 = vcmask 400384
      %v1325 = vsel %vm1324, %v1071, 0.0
      %1326 = vadd.xlane.f32.xlu0 %v1325
      %v1327 = vpop.xlane.xlu0 %1326
      %v1328 = vsel %vm1324, %v1076, 0.0
      %1329 = vadd.xlane.f32.xlu0 %v1328
      %v1330 = vpop.xlane.xlu0 %1329
      %v1331 = vsel %vm1324, %v1081, 0.0
      %1332 = vadd.xlane.f32.xlu0 %v1331
      %v1333 = vpop.xlane.xlu0 %1332
      %v1334 = vsel %vm1324, %v1086, 0.0
      %1335 = vadd.xlane.f32.xlu0 %v1334
      %v1336 = vpop.xlane.xlu0 %1335
      %v1337 = vsel %vm1324, %v1091, 0.0
      %1338 = vadd.xlane.f32.xlu0 %v1337
      %v1339 = vpop.xlane.xlu0 %1338
      %v1340 = vsel %vm1324, %v1096, 0.0
      %1341 = vadd.xlane.f32.xlu0 %v1340
      %v1342 = vpop.xlane.xlu0 %1341
      %v1343 = vsel %vm1324, %v1101, 0.0
      %1344 = vadd.xlane.f32.xlu0 %v1343
      %v1345 = vpop.xlane.xlu0 %1344
      %v1346 = vsel %vm1324, %v1106, 0.0
      %1347 = vadd.xlane.f32.xlu0 %v1346
      %v1348 = vpop.xlane.xlu0 %1347
      %v1349 = vsel %vm1324, %v1111, 0.0
      %1350 = vadd.xlane.f32.xlu0 %v1349
      %v1351 = vpop.xlane.xlu0 %1350
      %v1352 = vsel %vm1324, %v1116, 0.0
      %1353 = vadd.xlane.f32.xlu0 %v1352
      %v1354 = vpop.xlane.xlu0 %1353
      %v1355 = vsel %vm1324, %v1121, 0.0
      %1356 = vadd.xlane.f32.xlu0 %v1355
      %v1357 = vpop.xlane.xlu0 %1356
      %v1358 = vsel %vm1324, %v1126, 0.0
      %1359 = vadd.xlane.f32.xlu0 %v1358
      %v1360 = vpop.xlane.xlu0 %1359
      %v1361 = vsel %vm1324, %v1131, 0.0
      %1362 = vadd.xlane.f32.xlu0 %v1361
      %v1363 = vpop.xlane.xlu0 %1362
      %v1364 = vsel %vm1324, %v1136, 0.0
      %1365 = vadd.xlane.f32.xlu0 %v1364
      %v1366 = vpop.xlane.xlu0 %1365
      %v1367 = vsel %vm1324, %v1141, 0.0
      %1368 = vadd.xlane.f32.xlu0 %v1367
      %v1369 = vpop.xlane.xlu0 %1368
      %v1370 = vsel %vm1324, %v1146, 0.0
      %1371 = vadd.xlane.f32.xlu0 %v1370
      %v1372 = vpop.xlane.xlu0 %1371
      %v1373 = vsel %vm1324, %v1151, 0.0
      %1374 = vadd.xlane.f32.xlu0 %v1373
      %v1375 = vpop.xlane.xlu0 %1374
      %v1376 = vsel %vm1324, %v1156, 0.0
      %1377 = vadd.xlane.f32.xlu0 %v1376
      %v1378 = vpop.xlane.xlu0 %1377
      %v1379 = vsel %vm1324, %v1161, 0.0
      %1380 = vadd.xlane.f32.xlu0 %v1379
      %v1381 = vpop.xlane.xlu0 %1380
      %v1382 = vsel %vm1324, %v1166, 0.0
      %1383 = vadd.xlane.f32.xlu0 %v1382
      %v1384 = vpop.xlane.xlu0 %1383
      %v1385 = vsel %vm1324, %v1171, 0.0
      %1386 = vadd.xlane.f32.xlu0 %v1385
      %v1387 = vpop.xlane.xlu0 %1386
      %v1388 = vsel %vm1324, %v1176, 0.0
      %1389 = vadd.xlane.f32.xlu0 %v1388
      %v1390 = vpop.xlane.xlu0 %1389
      %v1391 = vsel %vm1324, %v1181, 0.0
      %1392 = vadd.xlane.f32.xlu0 %v1391
      %v1393 = vpop.xlane.xlu0 %1392
      %v1394 = vsel %vm1324, %v1186, 0.0
      %1395 = vadd.xlane.f32.xlu0 %v1394
      %v1396 = vpop.xlane.xlu0 %1395
      %v1397 = vsel %vm1324, %v1191, 0.0
      %1398 = vadd.xlane.f32.xlu0 %v1397
      %v1399 = vpop.xlane.xlu0 %1398
      %v1400 = vsel %vm1324, %v1196, 0.0
      %1401 = vadd.xlane.f32.xlu0 %v1400
      %v1402 = vpop.xlane.xlu0 %1401
      %v1403 = vsel %vm1324, %v1201, 0.0
      %1404 = vadd.xlane.f32.xlu0 %v1403
      %v1405 = vpop.xlane.xlu0 %1404
      %v1406 = vsel %vm1324, %v1206, 0.0
      %1407 = vadd.xlane.f32.xlu0 %v1406
      %v1408 = vpop.xlane.xlu0 %1407
      %v1409 = vsel %vm1324, %v1211, 0.0
      %1410 = vadd.xlane.f32.xlu0 %v1409
      %v1411 = vpop.xlane.xlu0 %1410
      %v1412 = vsel %vm1324, %v1216, 0.0
      %1413 = vadd.xlane.f32.xlu0 %v1412
      %v1414 = vpop.xlane.xlu0 %1413
      %v1415 = vsel %vm1324, %v1221, 0.0
      %1416 = vadd.xlane.f32.xlu0 %v1415
      %v1417 = vpop.xlane.xlu0 %1416
      %v1418 = vsel %vm1324, %v1226, 0.0
      %1419 = vadd.xlane.f32.xlu0 %v1418
      %v1420 = vpop.xlane.xlu0 %1419
      %v1421 = vsel %vm1324, %v1231, 0.0
      %1422 = vadd.xlane.f32.xlu0 %v1421
      %v1423 = vpop.xlane.xlu0 %1422
      %v1424 = vsel %vm1324, %v1236, 0.0
      %1425 = vadd.xlane.f32.xlu0 %v1424
      %v1426 = vpop.xlane.xlu0 %1425
      %v1427 = vsel %vm1324, %v1241, 0.0
      %1428 = vadd.xlane.f32.xlu0 %v1427
      %v1429 = vpop.xlane.xlu0 %1428
      %v1430 = vsel %vm1324, %v1246, 0.0
      %1431 = vadd.xlane.f32.xlu0 %v1430
      %v1432 = vpop.xlane.xlu0 %1431
      %v1433 = vsel %vm1324, %v1251, 0.0
      %1434 = vadd.xlane.f32.xlu0 %v1433
      %v1435 = vpop.xlane.xlu0 %1434
      %v1436 = vsel %vm1324, %v1256, 0.0
      %1437 = vadd.xlane.f32.xlu0 %v1436
      %v1438 = vpop.xlane.xlu0 %1437
      %v1439 = vsel %vm1324, %v1261, 0.0
      %1440 = vadd.xlane.f32.xlu0 %v1439
      %v1441 = vpop.xlane.xlu0 %1440
      %v1442 = vsel %vm1324, %v1266, 0.0
      %1443 = vadd.xlane.f32.xlu0 %v1442
      %v1444 = vpop.xlane.xlu0 %1443
      %v1445 = vsel %vm1324, %v1271, 0.0
      %1446 = vadd.xlane.f32.xlu0 %v1445
      %v1447 = vpop.xlane.xlu0 %1446
      %v1448 = vsel %vm1324, %v1276, 0.0
      %1449 = vadd.xlane.f32.xlu0 %v1448
      %v1450 = vpop.xlane.xlu0 %1449
      %v1451 = vsel %vm1324, %v1281, 0.0
      %1452 = vadd.xlane.f32.xlu0 %v1451
      %v1453 = vpop.xlane.xlu0 %1452
      %v1454 = vsel %vm1324, %v1286, 0.0
      %1455 = vadd.xlane.f32.xlu0 %v1454
      %v1456 = vpop.xlane.xlu0 %1455
      %v1457 = vsel %vm1324, %v1291, 0.0
      %1458 = vadd.xlane.f32.xlu0 %v1457
      %v1459 = vpop.xlane.xlu0 %1458
      %v1460 = vsel %vm1324, %v1296, 0.0
      %1461 = vadd.xlane.f32.xlu0 %v1460
      %v1462 = vpop.xlane.xlu0 %1461
      %v1463 = vsel %vm1324, %v1301, 0.0
      %1464 = vadd.xlane.f32.xlu0 %v1463
      %v1465 = vpop.xlane.xlu0 %1464
      %v1466 = vsel %vm1324, %v1306, 0.0
      %1467 = vadd.xlane.f32.xlu0 %v1466
      %v1468 = vpop.xlane.xlu0 %1467
      %v1469 = vsel %vm1324, %v1311, 0.0
      %1470 = vadd.xlane.f32.xlu0 %v1469
      %v1471 = vpop.xlane.xlu0 %1470
      %v1472 = vsel %vm1324, %v1316, 0.0
      %1473 = vadd.xlane.f32.xlu0 %v1472
      %v1474 = vpop.xlane.xlu0 %1473
      %v1475 = vsel %vm1324, %v1321, 0.0
      %1476 = vadd.xlane.f32.xlu0 %v1475
      %v1477 = vpop.xlane.xlu0 %1476
      %v1478 = vmul.f32 %v1071, %v1071
      %v1479 = vmul.f32 %v1076, %v1076
      %v1480 = vmul.f32 %v1081, %v1081
      %v1481 = vmul.f32 %v1086, %v1086
      %v1482 = vmul.f32 %v1091, %v1091
      %v1483 = vmul.f32 %v1096, %v1096
      %v1484 = vmul.f32 %v1101, %v1101
      %v1485 = vmul.f32 %v1106, %v1106
      %v1486 = vmul.f32 %v1111, %v1111
      %v1487 = vmul.f32 %v1116, %v1116
      %v1488 = vmul.f32 %v1121, %v1121
      %v1489 = vmul.f32 %v1126, %v1126
      %v1490 = vmul.f32 %v1131, %v1131
      %v1491 = vmul.f32 %v1136, %v1136
      %v1492 = vmul.f32 %v1141, %v1141
      %v1493 = vmul.f32 %v1146, %v1146
      %v1494 = vmul.f32 %v1151, %v1151
      %v1495 = vmul.f32 %v1156, %v1156
      %v1496 = vmul.f32 %v1161, %v1161
      %v1497 = vmul.f32 %v1166, %v1166
      %v1498 = vmul.f32 %v1171, %v1171
      %v1499 = vmul.f32 %v1176, %v1176
      %v1500 = vmul.f32 %v1181, %v1181
      %v1501 = vmul.f32 %v1186, %v1186
      %v1502 = vmul.f32 %v1191, %v1191
      %v1503 = vmul.f32 %v1196, %v1196
      %v1504 = vmul.f32 %v1201, %v1201
      %v1505 = vmul.f32 %v1206, %v1206
      %v1506 = vmul.f32 %v1211, %v1211
      %v1507 = vmul.f32 %v1216, %v1216
      %v1508 = vmul.f32 %v1221, %v1221
      %v1509 = vmul.f32 %v1226, %v1226
      %v1510 = vmul.f32 %v1231, %v1231
      %v1511 = vmul.f32 %v1236, %v1236
      %v1512 = vmul.f32 %v1241, %v1241
      %v1513 = vmul.f32 %v1246, %v1246
      %v1514 = vmul.f32 %v1251, %v1251
      %v1515 = vmul.f32 %v1256, %v1256
      %v1516 = vmul.f32 %v1261, %v1261
      %v1517 = vmul.f32 %v1266, %v1266
      %v1518 = vmul.f32 %v1271, %v1271
      %v1519 = vmul.f32 %v1276, %v1276
      %v1520 = vmul.f32 %v1281, %v1281
      %v1521 = vmul.f32 %v1286, %v1286
      %v1522 = vmul.f32 %v1291, %v1291
      %v1523 = vmul.f32 %v1296, %v1296
      %v1524 = vmul.f32 %v1301, %v1301
      %v1525 = vmul.f32 %v1306, %v1306
      %v1526 = vmul.f32 %v1311, %v1311
      %v1527 = vmul.f32 %v1316, %v1316
      %v1528 = vmul.f32 %v1321, %v1321
      %v1529 = vsel %vm1324, %v1478, 0.0
      %1530 = vadd.xlane.f32.xlu0 %v1529
      %v1531 = vpop.xlane.xlu0 %1530
      %v1532 = vsel %vm1324, %v1479, 0.0
      %1533 = vadd.xlane.f32.xlu0 %v1532
      %v1534 = vpop.xlane.xlu0 %1533
      %v1535 = vsel %vm1324, %v1480, 0.0
      %1536 = vadd.xlane.f32.xlu0 %v1535
      %v1537 = vpop.xlane.xlu0 %1536
      %v1538 = vsel %vm1324, %v1481, 0.0
      %1539 = vadd.xlane.f32.xlu0 %v1538
      %v1540 = vpop.xlane.xlu0 %1539
      %v1541 = vsel %vm1324, %v1482, 0.0
      %1542 = vadd.xlane.f32.xlu0 %v1541
      %v1543 = vpop.xlane.xlu0 %1542
      %v1544 = vsel %vm1324, %v1483, 0.0
      %1545 = vadd.xlane.f32.xlu0 %v1544
      %v1546 = vpop.xlane.xlu0 %1545
      %v1547 = vsel %vm1324, %v1484, 0.0
      %1548 = vadd.xlane.f32.xlu0 %v1547
      %v1549 = vpop.xlane.xlu0 %1548
      %v1550 = vsel %vm1324, %v1485, 0.0
      %1551 = vadd.xlane.f32.xlu0 %v1550
      %v1552 = vpop.xlane.xlu0 %1551
      %v1553 = vsel %vm1324, %v1486, 0.0
      %1554 = vadd.xlane.f32.xlu0 %v1553
      %v1555 = vpop.xlane.xlu0 %1554
      %v1556 = vsel %vm1324, %v1487, 0.0
      %1557 = vadd.xlane.f32.xlu0 %v1556
      %v1558 = vpop.xlane.xlu0 %1557
      %v1559 = vsel %vm1324, %v1488, 0.0
      %1560 = vadd.xlane.f32.xlu0 %v1559
      %v1561 = vpop.xlane.xlu0 %1560
      %v1562 = vsel %vm1324, %v1489, 0.0
      %1563 = vadd.xlane.f32.xlu0 %v1562
      %v1564 = vpop.xlane.xlu0 %1563
      %v1565 = vsel %vm1324, %v1490, 0.0
      %1566 = vadd.xlane.f32.xlu0 %v1565
      %v1567 = vpop.xlane.xlu0 %1566
      %v1568 = vsel %vm1324, %v1491, 0.0
      %1569 = vadd.xlane.f32.xlu0 %v1568
      %v1570 = vpop.xlane.xlu0 %1569
      %v1571 = vsel %vm1324, %v1492, 0.0
      %1572 = vadd.xlane.f32.xlu0 %v1571
      %v1573 = vpop.xlane.xlu0 %1572
      %v1574 = vsel %vm1324, %v1493, 0.0
      %1575 = vadd.xlane.f32.xlu0 %v1574
      %v1576 = vpop.xlane.xlu0 %1575
      %v1577 = vsel %vm1324, %v1494, 0.0
      %1578 = vadd.xlane.f32.xlu0 %v1577
      %v1579 = vpop.xlane.xlu0 %1578
      %v1580 = vsel %vm1324, %v1495, 0.0
      %1581 = vadd.xlane.f32.xlu0 %v1580
      %v1582 = vpop.xlane.xlu0 %1581
      %v1583 = vsel %vm1324, %v1496, 0.0
      %1584 = vadd.xlane.f32.xlu0 %v1583
      %v1585 = vpop.xlane.xlu0 %1584
      %v1586 = vsel %vm1324, %v1497, 0.0
      %1587 = vadd.xlane.f32.xlu0 %v1586
      %v1588 = vpop.xlane.xlu0 %1587
      %v1589 = vsel %vm1324, %v1498, 0.0
      %1590 = vadd.xlane.f32.xlu0 %v1589
      %v1591 = vpop.xlane.xlu0 %1590
      %v1592 = vsel %vm1324, %v1499, 0.0
      %1593 = vadd.xlane.f32.xlu0 %v1592
      %v1594 = vpop.xlane.xlu0 %1593
      %v1595 = vsel %vm1324, %v1500, 0.0
      %1596 = vadd.xlane.f32.xlu0 %v1595
      %v1597 = vpop.xlane.xlu0 %1596
      %v1598 = vsel %vm1324, %v1501, 0.0
      %1599 = vadd.xlane.f32.xlu0 %v1598
      %v1600 = vpop.xlane.xlu0 %1599
      %v1601 = vsel %vm1324, %v1502, 0.0
      %1602 = vadd.xlane.f32.xlu0 %v1601
      %v1603 = vpop.xlane.xlu0 %1602
      %v1604 = vsel %vm1324, %v1503, 0.0
      %1605 = vadd.xlane.f32.xlu0 %v1604
      %v1606 = vpop.xlane.xlu0 %1605
      %v1607 = vsel %vm1324, %v1504, 0.0
      %1608 = vadd.xlane.f32.xlu0 %v1607
      %v1609 = vpop.xlane.xlu0 %1608
      %v1610 = vsel %vm1324, %v1505, 0.0
      %1611 = vadd.xlane.f32.xlu0 %v1610
      %v1612 = vpop.xlane.xlu0 %1611
      %v1613 = vsel %vm1324, %v1506, 0.0
      %1614 = vadd.xlane.f32.xlu0 %v1613
      %v1615 = vpop.xlane.xlu0 %1614
      %v1616 = vsel %vm1324, %v1507, 0.0
      %1617 = vadd.xlane.f32.xlu0 %v1616
      %v1618 = vpop.xlane.xlu0 %1617
      %v1619 = vsel %vm1324, %v1508, 0.0
      %1620 = vadd.xlane.f32.xlu0 %v1619
      %v1621 = vpop.xlane.xlu0 %1620
      %v1622 = vsel %vm1324, %v1509, 0.0
      %1623 = vadd.xlane.f32.xlu0 %v1622
      %v1624 = vpop.xlane.xlu0 %1623
      %v1625 = vsel %vm1324, %v1510, 0.0
      %1626 = vadd.xlane.f32.xlu0 %v1625
      %v1627 = vpop.xlane.xlu0 %1626
      %v1628 = vsel %vm1324, %v1511, 0.0
      %1629 = vadd.xlane.f32.xlu0 %v1628
      %v1630 = vpop.xlane.xlu0 %1629
      %v1631 = vsel %vm1324, %v1512, 0.0
      %1632 = vadd.xlane.f32.xlu0 %v1631
      %v1633 = vpop.xlane.xlu0 %1632
      %v1634 = vsel %vm1324, %v1513, 0.0
      %1635 = vadd.xlane.f32.xlu0 %v1634
      %v1636 = vpop.xlane.xlu0 %1635
      %v1637 = vsel %vm1324, %v1514, 0.0
      %1638 = vadd.xlane.f32.xlu0 %v1637
      %v1639 = vpop.xlane.xlu0 %1638
      %v1640 = vsel %vm1324, %v1515, 0.0
      %1641 = vadd.xlane.f32.xlu0 %v1640
      %v1642 = vpop.xlane.xlu0 %1641
      %v1643 = vsel %vm1324, %v1516, 0.0
      %1644 = vadd.xlane.f32.xlu0 %v1643
      %v1645 = vpop.xlane.xlu0 %1644
      %v1646 = vsel %vm1324, %v1517, 0.0
      %1647 = vadd.xlane.f32.xlu0 %v1646
      %v1648 = vpop.xlane.xlu0 %1647
      %v1649 = vsel %vm1324, %v1518, 0.0
      %1650 = vadd.xlane.f32.xlu0 %v1649
      %v1651 = vpop.xlane.xlu0 %1650
      %v1652 = vsel %vm1324, %v1519, 0.0
      %1653 = vadd.xlane.f32.xlu0 %v1652
      %v1654 = vpop.xlane.xlu0 %1653
      %v1655 = vsel %vm1324, %v1520, 0.0
      %1656 = vadd.xlane.f32.xlu0 %v1655
      %v1657 = vpop.xlane.xlu0 %1656
      %v1658 = vsel %vm1324, %v1521, 0.0
      %1659 = vadd.xlane.f32.xlu0 %v1658
      %v1660 = vpop.xlane.xlu0 %1659
      %v1661 = vsel %vm1324, %v1522, 0.0
      %1662 = vadd.xlane.f32.xlu0 %v1661
      %v1663 = vpop.xlane.xlu0 %1662
      %v1664 = vsel %vm1324, %v1523, 0.0
      %1665 = vadd.xlane.f32.xlu0 %v1664
      %v1666 = vpop.xlane.xlu0 %1665
      %v1667 = vsel %vm1324, %v1524, 0.0
      %1668 = vadd.xlane.f32.xlu0 %v1667
      %v1669 = vpop.xlane.xlu0 %1668
      %v1670 = vsel %vm1324, %v1525, 0.0
      %1671 = vadd.xlane.f32.xlu0 %v1670
      %v1672 = vpop.xlane.xlu0 %1671
      %v1673 = vsel %vm1324, %v1526, 0.0
      %1674 = vadd.xlane.f32.xlu0 %v1673
      %v1675 = vpop.xlane.xlu0 %1674
      %v1676 = vsel %vm1324, %v1527, 0.0
      %1677 = vadd.xlane.f32.xlu0 %v1676
      %v1678 = vpop.xlane.xlu0 %1677
      %v1679 = vsel %vm1324, %v1528, 0.0
      %1680 = vadd.xlane.f32.xlu0 %v1679
      %v1681 = vpop.xlane.xlu0 %1680
      %v1682 = vmul.f32 %v1327, 0.020408163
      %v1683 = vmul.f32 %v1330, 0.020408163
      %v1684 = vmul.f32 %v1333, 0.020408163
      %v1685 = vmul.f32 %v1336, 0.020408163
      %v1686 = vmul.f32 %v1339, 0.020408163
      %v1687 = vmul.f32 %v1342, 0.020408163
      %v1688 = vmul.f32 %v1345, 0.020408163
      %v1689 = vmul.f32 %v1348, 0.020408163
      %v1690 = vmul.f32 %v1351, 0.020408163
      %v1691 = vmul.f32 %v1354, 0.020408163
      %v1692 = vmul.f32 %v1357, 0.020408163
      %v1693 = vmul.f32 %v1360, 0.020408163
      %v1694 = vmul.f32 %v1363, 0.020408163
      %v1695 = vmul.f32 %v1366, 0.020408163
      %v1696 = vmul.f32 %v1369, 0.020408163
      %v1697 = vmul.f32 %v1372, 0.020408163
      %v1698 = vmul.f32 %v1375, 0.020408163
      %v1699 = vmul.f32 %v1378, 0.020408163
      %v1700 = vmul.f32 %v1381, 0.020408163
      %v1701 = vmul.f32 %v1384, 0.020408163
      %v1702 = vmul.f32 %v1387, 0.020408163
      %v1703 = vmul.f32 %v1390, 0.020408163
      %v1704 = vmul.f32 %v1393, 0.020408163
      %v1705 = vmul.f32 %v1396, 0.020408163
      %v1706 = vmul.f32 %v1399, 0.020408163
      %v1707 = vmul.f32 %v1402, 0.020408163
      %v1708 = vmul.f32 %v1405, 0.020408163
      %v1709 = vmul.f32 %v1408, 0.020408163
      %v1710 = vmul.f32 %v1411, 0.020408163
      %v1711 = vmul.f32 %v1414, 0.020408163
      %v1712 = vmul.f32 %v1417, 0.020408163
      %v1713 = vmul.f32 %v1420, 0.020408163
      %v1714 = vmul.f32 %v1423, 0.020408163
      %v1715 = vmul.f32 %v1426, 0.020408163
      %v1716 = vmul.f32 %v1429, 0.020408163
      %v1717 = vmul.f32 %v1432, 0.020408163
      %v1718 = vmul.f32 %v1435, 0.020408163
      %v1719 = vmul.f32 %v1438, 0.020408163
      %v1720 = vmul.f32 %v1441, 0.020408163
      %v1721 = vmul.f32 %v1444, 0.020408163
      %v1722 = vmul.f32 %v1447, 0.020408163
      %v1723 = vmul.f32 %v1450, 0.020408163
      %v1724 = vmul.f32 %v1453, 0.020408163
      %v1725 = vmul.f32 %v1456, 0.020408163
      %v1726 = vmul.f32 %v1459, 0.020408163
      %v1727 = vmul.f32 %v1462, 0.020408163
      %v1728 = vmul.f32 %v1465, 0.020408163
      %v1729 = vmul.f32 %v1468, 0.020408163
      %v1730 = vmul.f32 %v1471, 0.020408163
      %v1731 = vmul.f32 %v1474, 0.020408163
      %v1732 = vmul.f32 %v1477, 0.020408163
      %v1733 = vmul.f32 %v1531, 0.020408163
      %v1734 = vmul.f32 %v1534, 0.020408163
      %v1735 = vmul.f32 %v1537, 0.020408163
      %v1736 = vmul.f32 %v1540, 0.020408163
      %v1737 = vmul.f32 %v1543, 0.020408163
      %v1738 = vmul.f32 %v1546, 0.020408163
      %v1739 = vmul.f32 %v1549, 0.020408163
      %v1740 = vmul.f32 %v1552, 0.020408163
      %v1741 = vmul.f32 %v1555, 0.020408163
      %v1742 = vmul.f32 %v1558, 0.020408163
      %v1743 = vmul.f32 %v1561, 0.020408163
      %v1744 = vmul.f32 %v1564, 0.020408163
      %v1745 = vmul.f32 %v1567, 0.020408163
      %v1746 = vmul.f32 %v1570, 0.020408163
      %v1747 = vmul.f32 %v1573, 0.020408163
      %v1748 = vmul.f32 %v1576, 0.020408163
      %v1749 = vmul.f32 %v1579, 0.020408163
      %v1750 = vmul.f32 %v1582, 0.020408163
      %v1751 = vmul.f32 %v1585, 0.020408163
      %v1752 = vmul.f32 %v1588, 0.020408163
      %v1753 = vmul.f32 %v1591, 0.020408163
      %v1754 = vmul.f32 %v1594, 0.020408163
      %v1755 = vmul.f32 %v1597, 0.020408163
      %v1756 = vmul.f32 %v1600, 0.020408163
      %v1757 = vmul.f32 %v1603, 0.020408163
      %v1758 = vmul.f32 %v1606, 0.020408163
      %v1759 = vmul.f32 %v1609, 0.020408163
      %v1760 = vmul.f32 %v1612, 0.020408163
      %v1761 = vmul.f32 %v1615, 0.020408163
      %v1762 = vmul.f32 %v1618, 0.020408163
      %v1763 = vmul.f32 %v1621, 0.020408163
      %v1764 = vmul.f32 %v1624, 0.020408163
      %v1765 = vmul.f32 %v1627, 0.020408163
      %v1766 = vmul.f32 %v1630, 0.020408163
      %v1767 = vmul.f32 %v1633, 0.020408163
      %v1768 = vmul.f32 %v1636, 0.020408163
      %v1769 = vmul.f32 %v1639, 0.020408163
      %v1770 = vmul.f32 %v1642, 0.020408163
      %v1771 = vmul.f32 %v1645, 0.020408163
      %v1772 = vmul.f32 %v1648, 0.020408163
      %v1773 = vmul.f32 %v1651, 0.020408163
      %v1774 = vmul.f32 %v1654, 0.020408163
      %v1775 = vmul.f32 %v1657, 0.020408163
      %v1776 = vmul.f32 %v1660, 0.020408163
      %v1777 = vmul.f32 %v1663, 0.020408163
      %v1778 = vmul.f32 %v1666, 0.020408163
      %v1779 = vmul.f32 %v1669, 0.020408163
      %v1780 = vmul.f32 %v1672, 0.020408163
      %v1781 = vmul.f32 %v1675, 0.020408163
      %v1782 = vmul.f32 %v1678, 0.020408163
      %v1783 = vmul.f32 %v1681, 0.020408163
      %v1784 = vmul.f32 %v1682, %v1682
      %v1785 = vmul.f32 %v1683, %v1683
      %v1786 = vmul.f32 %v1684, %v1684
      %v1787 = vmul.f32 %v1685, %v1685
      %v1788 = vmul.f32 %v1686, %v1686
      %v1789 = vmul.f32 %v1687, %v1687
      %v1790 = vmul.f32 %v1688, %v1688
      %v1791 = vmul.f32 %v1689, %v1689
      %v1792 = vmul.f32 %v1690, %v1690
      %v1793 = vmul.f32 %v1691, %v1691
      %v1794 = vmul.f32 %v1692, %v1692
      %v1795 = vmul.f32 %v1693, %v1693
      %v1796 = vmul.f32 %v1694, %v1694
      %v1797 = vmul.f32 %v1695, %v1695
      %v1798 = vmul.f32 %v1696, %v1696
      %v1799 = vmul.f32 %v1697, %v1697
      %v1800 = vmul.f32 %v1698, %v1698
      %v1801 = vmul.f32 %v1699, %v1699
      %v1802 = vmul.f32 %v1700, %v1700
      %v1803 = vmul.f32 %v1701, %v1701
      %v1804 = vmul.f32 %v1702, %v1702
      %v1805 = vmul.f32 %v1703, %v1703
      %v1806 = vmul.f32 %v1704, %v1704
      %v1807 = vmul.f32 %v1705, %v1705
      %v1808 = vmul.f32 %v1706, %v1706
      %v1809 = vmul.f32 %v1707, %v1707
      %v1810 = vmul.f32 %v1708, %v1708
      %v1811 = vmul.f32 %v1709, %v1709
      %v1812 = vmul.f32 %v1710, %v1710
      %v1813 = vmul.f32 %v1711, %v1711
      %v1814 = vmul.f32 %v1712, %v1712
      %v1815 = vmul.f32 %v1713, %v1713
      %v1816 = vmul.f32 %v1714, %v1714
      %v1817 = vmul.f32 %v1715, %v1715
      %v1818 = vmul.f32 %v1716, %v1716
      %v1819 = vmul.f32 %v1717, %v1717
      %v1820 = vmul.f32 %v1718, %v1718
      %v1821 = vmul.f32 %v1719, %v1719
      %v1822 = vmul.f32 %v1720, %v1720
      %v1823 = vmul.f32 %v1721, %v1721
      %v1824 = vmul.f32 %v1722, %v1722
      %v1825 = vmul.f32 %v1723, %v1723
      %v1826 = vmul.f32 %v1724, %v1724
      %v1827 = vmul.f32 %v1725, %v1725
      %v1828 = vmul.f32 %v1726, %v1726
      %v1829 = vmul.f32 %v1727, %v1727
      %v1830 = vmul.f32 %v1728, %v1728
      %v1831 = vmul.f32 %v1729, %v1729
      %v1832 = vmul.f32 %v1730, %v1730
      %v1833 = vmul.f32 %v1731, %v1731
      %v1834 = vmul.f32 %v1732, %v1732
      %v1835 = vsub.f32 %v1733, %v1784
      %v1836 = vsub.f32 %v1734, %v1785
      %v1837 = vsub.f32 %v1735, %v1786
      %v1838 = vsub.f32 %v1736, %v1787
      %v1839 = vsub.f32 %v1737, %v1788
      %v1840 = vsub.f32 %v1738, %v1789
      %v1841 = vsub.f32 %v1739, %v1790
      %v1842 = vsub.f32 %v1740, %v1791
      %v1843 = vsub.f32 %v1741, %v1792
      %v1844 = vsub.f32 %v1742, %v1793
      %v1845 = vsub.f32 %v1743, %v1794
      %v1846 = vsub.f32 %v1744, %v1795
      %v1847 = vsub.f32 %v1745, %v1796
      %v1848 = vsub.f32 %v1746, %v1797
      %v1849 = vsub.f32 %v1747, %v1798
      %v1850 = vsub.f32 %v1748, %v1799
      %v1851 = vsub.f32 %v1749, %v1800
      %v1852 = vsub.f32 %v1750, %v1801
      %v1853 = vsub.f32 %v1751, %v1802
      %v1854 = vsub.f32 %v1752, %v1803
      %v1855 = vsub.f32 %v1753, %v1804
      %v1856 = vsub.f32 %v1754, %v1805
      %v1857 = vsub.f32 %v1755, %v1806
      %v1858 = vsub.f32 %v1756, %v1807
      %v1859 = vsub.f32 %v1757, %v1808
      %v1860 = vsub.f32 %v1758, %v1809
      %v1861 = vsub.f32 %v1759, %v1810
      %v1862 = vsub.f32 %v1760, %v1811
      %v1863 = vsub.f32 %v1761, %v1812
      %v1864 = vsub.f32 %v1762, %v1813
      %v1865 = vsub.f32 %v1763, %v1814
      %v1866 = vsub.f32 %v1764, %v1815
      %v1867 = vsub.f32 %v1765, %v1816
      %v1868 = vsub.f32 %v1766, %v1817
      %v1869 = vsub.f32 %v1767, %v1818
      %v1870 = vsub.f32 %v1768, %v1819
      %v1871 = vsub.f32 %v1769, %v1820
      %v1872 = vsub.f32 %v1770, %v1821
      %v1873 = vsub.f32 %v1771, %v1822
      %v1874 = vsub.f32 %v1772, %v1823
      %v1875 = vsub.f32 %v1773, %v1824
      %v1876 = vsub.f32 %v1774, %v1825
      %v1877 = vsub.f32 %v1775, %v1826
      %v1878 = vsub.f32 %v1776, %v1827
      %v1879 = vsub.f32 %v1777, %v1828
      %v1880 = vsub.f32 %v1778, %v1829
      %v1881 = vsub.f32 %v1779, %v1830
      %v1882 = vsub.f32 %v1780, %v1831
      %v1883 = vsub.f32 %v1781, %v1832
      %v1884 = vsub.f32 %v1782, %v1833
      %v1885 = vsub.f32 %v1783, %v1834
      %v1886 = vadd.f32 %v1835, 1e-05
      %v1887 = vadd.f32 %v1836, 1e-05
      %v1888 = vadd.f32 %v1837, 1e-05
      %v1889 = vadd.f32 %v1838, 1e-05
      %v1890 = vadd.f32 %v1839, 1e-05
      %v1891 = vadd.f32 %v1840, 1e-05
      %v1892 = vadd.f32 %v1841, 1e-05
      %v1893 = vadd.f32 %v1842, 1e-05
      %v1894 = vadd.f32 %v1843, 1e-05
      %v1895 = vadd.f32 %v1844, 1e-05
      %v1896 = vadd.f32 %v1845, 1e-05
      %v1897 = vadd.f32 %v1846, 1e-05
      %v1898 = vadd.f32 %v1847, 1e-05
      %v1899 = vadd.f32 %v1848, 1e-05
      %v1900 = vadd.f32 %v1849, 1e-05
      %v1901 = vadd.f32 %v1850, 1e-05
      %v1902 = vadd.f32 %v1851, 1e-05
      %v1903 = vadd.f32 %v1852, 1e-05
      %v1904 = vadd.f32 %v1853, 1e-05
      %v1905 = vadd.f32 %v1854, 1e-05
      %v1906 = vadd.f32 %v1855, 1e-05
      %v1907 = vadd.f32 %v1856, 1e-05
      %v1908 = vadd.f32 %v1857, 1e-05
      %v1909 = vadd.f32 %v1858, 1e-05
      %v1910 = vadd.f32 %v1859, 1e-05
      %v1911 = vadd.f32 %v1860, 1e-05
      %v1912 = vadd.f32 %v1861, 1e-05
      %v1913 = vadd.f32 %v1862, 1e-05
      %v1914 = vadd.f32 %v1863, 1e-05
      %v1915 = vadd.f32 %v1864, 1e-05
      %v1916 = vadd.f32 %v1865, 1e-05
      %v1917 = vadd.f32 %v1866, 1e-05
      %v1918 = vadd.f32 %v1867, 1e-05
      %v1919 = vadd.f32 %v1868, 1e-05
      %v1920 = vadd.f32 %v1869, 1e-05
      %v1921 = vadd.f32 %v1870, 1e-05
      %v1922 = vadd.f32 %v1871, 1e-05
      %v1923 = vadd.f32 %v1872, 1e-05
      %v1924 = vadd.f32 %v1873, 1e-05
      %v1925 = vadd.f32 %v1874, 1e-05
      %v1926 = vadd.f32 %v1875, 1e-05
      %v1927 = vadd.f32 %v1876, 1e-05
      %v1928 = vadd.f32 %v1877, 1e-05
      %v1929 = vadd.f32 %v1878, 1e-05
      %v1930 = vadd.f32 %v1879, 1e-05
      %v1931 = vadd.f32 %v1880, 1e-05
      %v1932 = vadd.f32 %v1881, 1e-05
      %v1933 = vadd.f32 %v1882, 1e-05
      %v1934 = vadd.f32 %v1883, 1e-05
      %v1935 = vadd.f32 %v1884, 1e-05
      %v1936 = vadd.f32 %v1885, 1e-05
      %v1937 = vrsqrt.pop %v1886
      %v1938 = vrsqrt.pop %v1887
      %v1939 = vrsqrt.pop %v1888
      %v1940 = vrsqrt.pop %v1889
      %v1941 = vrsqrt.pop %v1890
      %v1942 = vrsqrt.pop %v1891
      %v1943 = vrsqrt.pop %v1892
      %v1944 = vrsqrt.pop %v1893
      %v1945 = vrsqrt.pop %v1894
      %v1946 = vrsqrt.pop %v1895
      %v1947 = vrsqrt.pop %v1896
      %v1948 = vrsqrt.pop %v1897
      %v1949 = vrsqrt.pop %v1898
      %v1950 = vrsqrt.pop %v1899
      %v1951 = vrsqrt.pop %v1900
      %v1952 = vrsqrt.pop %v1901
      %v1953 = vrsqrt.pop %v1902
      %v1954 = vrsqrt.pop %v1903
      %v1955 = vrsqrt.pop %v1904
      %v1956 = vrsqrt.pop %v1905
      %v1957 = vrsqrt.pop %v1906
      %v1958 = vrsqrt.pop %v1907
      %v1959 = vrsqrt.pop %v1908
      %v1960 = vrsqrt.pop %v1909
      %v1961 = vrsqrt.pop %v1910
      %v1962 = vrsqrt.pop %v1911
      %v1963 = vrsqrt.pop %v1912
      %v1964 = vrsqrt.pop %v1913
      %v1965 = vrsqrt.pop %v1914
      %v1966 = vrsqrt.pop %v1915
      %v1967 = vrsqrt.pop %v1916
      %v1968 = vrsqrt.pop %v1917
      %v1969 = vrsqrt.pop %v1918
      %v1970 = vrsqrt.pop %v1919
      %v1971 = vrsqrt.pop %v1920
      %v1972 = vrsqrt.pop %v1921
      %v1973 = vrsqrt.pop %v1922
      %v1974 = vrsqrt.pop %v1923
      %v1975 = vrsqrt.pop %v1924
      %v1976 = vrsqrt.pop %v1925
      %v1977 = vrsqrt.pop %v1926
      %v1978 = vrsqrt.pop %v1927
      %v1979 = vrsqrt.pop %v1928
      %v1980 = vrsqrt.pop %v1929
      %v1981 = vrsqrt.pop %v1930
      %v1982 = vrsqrt.pop %v1931
      %v1983 = vrsqrt.pop %v1932
      %v1984 = vrsqrt.pop %v1933
      %v1985 = vrsqrt.pop %v1934
      %v1986 = vrsqrt.pop %v1935
      %v1987 = vrsqrt.pop %v1936
      %v1988 = vld [vmem:[%s261] sm:$0xff]
      %v1989 = vld [vmem:[%s261 + $0x8] sm:$0xff]
      %v1990 = vld [vmem:[%s261 + $0x10] sm:$0xff]
      %v1991 = vld [vmem:[%s261 + $0x18] sm:$0xff]
      %v1992 = vld [vmem:[%s261 + $0x20] sm:$0xff]
      %v1993 = vld [vmem:[%s261 + $0x28] sm:$0xff]
      %v1994 = vld [vmem:[%s261 + $0x30] sm:$0xff]
      %v1995 = vld [vmem:[%s261 + $0x38] sm:$0xff]
      %v1996 = vld [vmem:[%s261 + $0x40] sm:$0xff]
      %v1997 = vld [vmem:[%s261 + $0x48] sm:$0xff]
      %v1998 = vld [vmem:[%s261 + $0x50] sm:$0xff]
      %v1999 = vld [vmem:[%s261 + $0x58] sm:$0xff]
      %v2000 = vld [vmem:[%s261 + $0x60] sm:$0xff]
      %v2001 = vld [vmem:[%s261 + $0x68] sm:$0xff]
      %v2002 = vld [vmem:[%s261 + $0x70] sm:$0xff]
      %v2003 = vld [vmem:[%s261 + $0x78] sm:$0xff]
      %v2004 = vld [vmem:[%s261 + $0x80] sm:$0xff]
      %v2005 = vld [vmem:[%s261 + $0x88] sm:$0xff]
      %v2006 = vld [vmem:[%s261 + $0x90] sm:$0xff]
      %v2007 = vld [vmem:[%s261 + $0x98] sm:$0xff]
      %v2008 = vld [vmem:[%s261 + $0xa0] sm:$0xff]
      %v2009 = vld [vmem:[%s261 + $0xa8] sm:$0xff]
      %v2010 = vld [vmem:[%s261 + $0xb0] sm:$0xff]
      %v2011 = vld [vmem:[%s261 + $0xb8] sm:$0xff]
      %v2012 = vld [vmem:[%s261 + $0xc0] sm:$0xff]
      %v2013 = vld [vmem:[%s261 + $0xc8] sm:$0xff]
      %v2014 = vld [vmem:[%s261 + $0xd0] sm:$0xff]
      %v2015 = vld [vmem:[%s261 + $0xd8] sm:$0xff]
      %v2016 = vld [vmem:[%s261 + $0xe0] sm:$0xff]
      %v2017 = vld [vmem:[%s261 + $0xe8] sm:$0xff]
      %v2018 = vld [vmem:[%s261 + $0xf0] sm:$0xff]
      %v2019 = vld [vmem:[%s261 + $0xf8] sm:$0xff]
      %v2020 = vld [vmem:[%s261 + $0x100] sm:$0xff]
      %v2021 = vld [vmem:[%s261 + $0x108] sm:$0xff]
      %v2022 = vld [vmem:[%s261 + $0x110] sm:$0xff]
      %v2023 = vld [vmem:[%s261 + $0x118] sm:$0xff]
      %v2024 = vld [vmem:[%s261 + $0x120] sm:$0xff]
      %v2025 = vld [vmem:[%s261 + $0x128] sm:$0xff]
      %v2026 = vld [vmem:[%s261 + $0x130] sm:$0xff]
      %v2027 = vld [vmem:[%s261 + $0x138] sm:$0xff]
      %v2028 = vld [vmem:[%s261 + $0x140] sm:$0xff]
      %v2029 = vld [vmem:[%s261 + $0x148] sm:$0xff]
      %v2030 = vld [vmem:[%s261 + $0x150] sm:$0xff]
      %v2031 = vld [vmem:[%s261 + $0x158] sm:$0xff]
      %v2032 = vld [vmem:[%s261 + $0x160] sm:$0xff]
      %v2033 = vld [vmem:[%s261 + $0x168] sm:$0xff]
      %v2034 = vld [vmem:[%s261 + $0x170] sm:$0xff]
      %v2035 = vld [vmem:[%s261 + $0x178] sm:$0xff]
      %v2036 = vld [vmem:[%s261 + $0x180] sm:$0xff]
      %v2037 = vld [vmem:[%s261 + $0x188] sm:$0xff]
      %v2038 = vld [vmem:[%s261 + $0x190] sm:$0xff]
      %v2039 = vmul.f32 %v1937, %v1988
      %v2040 = vmul.f32 %v1938, %v1989
      %v2041 = vmul.f32 %v1939, %v1990
      %v2042 = vmul.f32 %v1940, %v1991
      %v2043 = vmul.f32 %v1941, %v1992
      %v2044 = vmul.f32 %v1942, %v1993
      %v2045 = vmul.f32 %v1943, %v1994
      %v2046 = vmul.f32 %v1944, %v1995
      %v2047 = vmul.f32 %v1945, %v1996
      %v2048 = vmul.f32 %v1946, %v1997
      %v2049 = vmul.f32 %v1947, %v1998
      %v2050 = vmul.f32 %v1948, %v1999
      %v2051 = vmul.f32 %v1949, %v2000
      %v2052 = vmul.f32 %v1950, %v2001
      %v2053 = vmul.f32 %v1951, %v2002
      %v2054 = vmul.f32 %v1952, %v2003
      %v2055 = vmul.f32 %v1953, %v2004
      %v2056 = vmul.f32 %v1954, %v2005
      %v2057 = vmul.f32 %v1955, %v2006
      %v2058 = vmul.f32 %v1956, %v2007
      %v2059 = vmul.f32 %v1957, %v2008
      %v2060 = vmul.f32 %v1958, %v2009
      %v2061 = vmul.f32 %v1959, %v2010
      %v2062 = vmul.f32 %v1960, %v2011
      %v2063 = vmul.f32 %v1961, %v2012
      %v2064 = vmul.f32 %v1962, %v2013
      %v2065 = vmul.f32 %v1963, %v2014
      %v2066 = vmul.f32 %v1964, %v2015
      %v2067 = vmul.f32 %v1965, %v2016
      %v2068 = vmul.f32 %v1966, %v2017
      %v2069 = vmul.f32 %v1967, %v2018
      %v2070 = vmul.f32 %v1968, %v2019
      %v2071 = vmul.f32 %v1969, %v2020
      %v2072 = vmul.f32 %v1970, %v2021
      %v2073 = vmul.f32 %v1971, %v2022
      %v2074 = vmul.f32 %v1972, %v2023
      %v2075 = vmul.f32 %v1973, %v2024
      %v2076 = vmul.f32 %v1974, %v2025
      %v2077 = vmul.f32 %v1975, %v2026
      %v2078 = vmul.f32 %v1976, %v2027
      %v2079 = vmul.f32 %v1977, %v2028
      %v2080 = vmul.f32 %v1978, %v2029
      %v2081 = vmul.f32 %v1979, %v2030
      %v2082 = vmul.f32 %v1980, %v2031
      %v2083 = vmul.f32 %v1981, %v2032
      %v2084 = vmul.f32 %v1982, %v2033
      %v2085 = vmul.f32 %v1983, %v2034
      %v2086 = vmul.f32 %v1984, %v2035
      %v2087 = vmul.f32 %v1985, %v2036
      %v2088 = vmul.f32 %v1986, %v2037
      %v2089 = vmul.f32 %v1987, %v2038
      %v2090 = vld [vmem:[%s267] sm:$0xff]
      %v2091 = vld [vmem:[%s267 + $0x8] sm:$0xff]
      %v2092 = vld [vmem:[%s267 + $0x10] sm:$0xff]
      %v2093 = vld [vmem:[%s267 + $0x18] sm:$0xff]
      %v2094 = vld [vmem:[%s267 + $0x20] sm:$0xff]
      %v2095 = vld [vmem:[%s267 + $0x28] sm:$0xff]
      %v2096 = vld [vmem:[%s267 + $0x30] sm:$0xff]
      %v2097 = vld [vmem:[%s267 + $0x38] sm:$0xff]
      %v2098 = vld [vmem:[%s267 + $0x40] sm:$0xff]
      %v2099 = vld [vmem:[%s267 + $0x48] sm:$0xff]
      %v2100 = vld [vmem:[%s267 + $0x50] sm:$0xff]
      %v2101 = vld [vmem:[%s267 + $0x58] sm:$0xff]
      %v2102 = vld [vmem:[%s267 + $0x60] sm:$0xff]
      %v2103 = vld [vmem:[%s267 + $0x68] sm:$0xff]
      %v2104 = vld [vmem:[%s267 + $0x70] sm:$0xff]
      %v2105 = vld [vmem:[%s267 + $0x78] sm:$0xff]
      %v2106 = vld [vmem:[%s267 + $0x80] sm:$0xff]
      %v2107 = vld [vmem:[%s267 + $0x88] sm:$0xff]
      %v2108 = vld [vmem:[%s267 + $0x90] sm:$0xff]
      %v2109 = vld [vmem:[%s267 + $0x98] sm:$0xff]
      %v2110 = vld [vmem:[%s267 + $0xa0] sm:$0xff]
      %v2111 = vld [vmem:[%s267 + $0xa8] sm:$0xff]
      %v2112 = vld [vmem:[%s267 + $0xb0] sm:$0xff]
      %v2113 = vld [vmem:[%s267 + $0xb8] sm:$0xff]
      %v2114 = vld [vmem:[%s267 + $0xc0] sm:$0xff]
      %v2115 = vld [vmem:[%s267 + $0xc8] sm:$0xff]
      %v2116 = vld [vmem:[%s267 + $0xd0] sm:$0xff]
      %v2117 = vld [vmem:[%s267 + $0xd8] sm:$0xff]
      %v2118 = vld [vmem:[%s267 + $0xe0] sm:$0xff]
      %v2119 = vld [vmem:[%s267 + $0xe8] sm:$0xff]
      %v2120 = vld [vmem:[%s267 + $0xf0] sm:$0xff]
      %v2121 = vld [vmem:[%s267 + $0xf8] sm:$0xff]
      %v2122 = vld [vmem:[%s267 + $0x100] sm:$0xff]
      %v2123 = vld [vmem:[%s267 + $0x108] sm:$0xff]
      %v2124 = vld [vmem:[%s267 + $0x110] sm:$0xff]
      %v2125 = vld [vmem:[%s267 + $0x118] sm:$0xff]
      %v2126 = vld [vmem:[%s267 + $0x120] sm:$0xff]
      %v2127 = vld [vmem:[%s267 + $0x128] sm:$0xff]
      %v2128 = vld [vmem:[%s267 + $0x130] sm:$0xff]
      %v2129 = vld [vmem:[%s267 + $0x138] sm:$0xff]
      %v2130 = vld [vmem:[%s267 + $0x140] sm:$0xff]
      %v2131 = vld [vmem:[%s267 + $0x148] sm:$0xff]
      %v2132 = vld [vmem:[%s267 + $0x150] sm:$0xff]
      %v2133 = vld [vmem:[%s267 + $0x158] sm:$0xff]
      %v2134 = vld [vmem:[%s267 + $0x160] sm:$0xff]
      %v2135 = vld [vmem:[%s267 + $0x168] sm:$0xff]
      %v2136 = vld [vmem:[%s267 + $0x170] sm:$0xff]
      %v2137 = vld [vmem:[%s267 + $0x178] sm:$0xff]
      %v2138 = vld [vmem:[%s267 + $0x180] sm:$0xff]
      %v2139 = vld [vmem:[%s267 + $0x188] sm:$0xff]
      %v2140 = vld [vmem:[%s267 + $0x190] sm:$0xff]
      %v2141 = vmul.f32 %v1682, %v2039
      %v2142 = vmul.f32 %v1683, %v2040
      %v2143 = vmul.f32 %v1684, %v2041
      %v2144 = vmul.f32 %v1685, %v2042
      %v2145 = vmul.f32 %v1686, %v2043
      %v2146 = vmul.f32 %v1687, %v2044
      %v2147 = vmul.f32 %v1688, %v2045
      %v2148 = vmul.f32 %v1689, %v2046
      %v2149 = vmul.f32 %v1690, %v2047
      %v2150 = vmul.f32 %v1691, %v2048
      %v2151 = vmul.f32 %v1692, %v2049
      %v2152 = vmul.f32 %v1693, %v2050
      %v2153 = vmul.f32 %v1694, %v2051
      %v2154 = vmul.f32 %v1695, %v2052
      %v2155 = vmul.f32 %v1696, %v2053
      %v2156 = vmul.f32 %v1697, %v2054
      %v2157 = vmul.f32 %v1698, %v2055
      %v2158 = vmul.f32 %v1699, %v2056
      %v2159 = vmul.f32 %v1700, %v2057
      %v2160 = vmul.f32 %v1701, %v2058
      %v2161 = vmul.f32 %v1702, %v2059
      %v2162 = vmul.f32 %v1703, %v2060
      %v2163 = vmul.f32 %v1704, %v2061
      %v2164 = vmul.f32 %v1705, %v2062
      %v2165 = vmul.f32 %v1706, %v2063
      %v2166 = vmul.f32 %v1707, %v2064
      %v2167 = vmul.f32 %v1708, %v2065
      %v2168 = vmul.f32 %v1709, %v2066
      %v2169 = vmul.f32 %v1710, %v2067
      %v2170 = vmul.f32 %v1711, %v2068
      %v2171 = vmul.f32 %v1712, %v2069
      %v2172 = vmul.f32 %v1713, %v2070
      %v2173 = vmul.f32 %v1714, %v2071
      %v2174 = vmul.f32 %v1715, %v2072
      %v2175 = vmul.f32 %v1716, %v2073
      %v2176 = vmul.f32 %v1717, %v2074
      %v2177 = vmul.f32 %v1718, %v2075
      %v2178 = vmul.f32 %v1719, %v2076
      %v2179 = vmul.f32 %v1720, %v2077
      %v2180 = vmul.f32 %v1721, %v2078
      %v2181 = vmul.f32 %v1722, %v2079
      %v2182 = vmul.f32 %v1723, %v2080
      %v2183 = vmul.f32 %v1724, %v2081
      %v2184 = vmul.f32 %v1725, %v2082
      %v2185 = vmul.f32 %v1726, %v2083
      %v2186 = vmul.f32 %v1727, %v2084
      %v2187 = vmul.f32 %v1728, %v2085
      %v2188 = vmul.f32 %v1729, %v2086
      %v2189 = vmul.f32 %v1730, %v2087
      %v2190 = vmul.f32 %v1731, %v2088
      %v2191 = vmul.f32 %v1732, %v2089
      %v2192 = vsub.f32 %v2090, %v2141
      %v2193 = vsub.f32 %v2091, %v2142
      %v2194 = vsub.f32 %v2092, %v2143
      %v2195 = vsub.f32 %v2093, %v2144
      %v2196 = vsub.f32 %v2094, %v2145
      %v2197 = vsub.f32 %v2095, %v2146
      %v2198 = vsub.f32 %v2096, %v2147
      %v2199 = vsub.f32 %v2097, %v2148
      %v2200 = vsub.f32 %v2098, %v2149
      %v2201 = vsub.f32 %v2099, %v2150
      %v2202 = vsub.f32 %v2100, %v2151
      %v2203 = vsub.f32 %v2101, %v2152
      %v2204 = vsub.f32 %v2102, %v2153
      %v2205 = vsub.f32 %v2103, %v2154
      %v2206 = vsub.f32 %v2104, %v2155
      %v2207 = vsub.f32 %v2105, %v2156
      %v2208 = vsub.f32 %v2106, %v2157
      %v2209 = vsub.f32 %v2107, %v2158
      %v2210 = vsub.f32 %v2108, %v2159
      %v2211 = vsub.f32 %v2109, %v2160
      %v2212 = vsub.f32 %v2110, %v2161
      %v2213 = vsub.f32 %v2111, %v2162
      %v2214 = vsub.f32 %v2112, %v2163
      %v2215 = vsub.f32 %v2113, %v2164
      %v2216 = vsub.f32 %v2114, %v2165
      %v2217 = vsub.f32 %v2115, %v2166
      %v2218 = vsub.f32 %v2116, %v2167
      %v2219 = vsub.f32 %v2117, %v2168
      %v2220 = vsub.f32 %v2118, %v2169
      %v2221 = vsub.f32 %v2119, %v2170
      %v2222 = vsub.f32 %v2120, %v2171
      %v2223 = vsub.f32 %v2121, %v2172
      %v2224 = vsub.f32 %v2122, %v2173
      %v2225 = vsub.f32 %v2123, %v2174
      %v2226 = vsub.f32 %v2124, %v2175
      %v2227 = vsub.f32 %v2125, %v2176
      %v2228 = vsub.f32 %v2126, %v2177
      %v2229 = vsub.f32 %v2127, %v2178
      %v2230 = vsub.f32 %v2128, %v2179
      %v2231 = vsub.f32 %v2129, %v2180
      %v2232 = vsub.f32 %v2130, %v2181
      %v2233 = vsub.f32 %v2131, %v2182
      %v2234 = vsub.f32 %v2132, %v2183
      %v2235 = vsub.f32 %v2133, %v2184
      %v2236 = vsub.f32 %v2134, %v2185
      %v2237 = vsub.f32 %v2135, %v2186
      %v2238 = vsub.f32 %v2136, %v2187
      %v2239 = vsub.f32 %v2137, %v2188
      %v2240 = vsub.f32 %v2138, %v2189
      %v2241 = vsub.f32 %v2139, %v2190
      %v2242 = vsub.f32 %v2140, %v2191
      %2244 = vset.pattern.permute.xlu0 0
      %2245 = vperm.xlu0 %2244, %v2039
      %v2246 = vpop.permute.xlu0 %2245
      %2249 = vset.pattern.permute.xlu0 0
      %2250 = vperm.xlu0 %2249, %v2040
      %v2251 = vpop.permute.xlu0 %2250
      %2254 = vset.pattern.permute.xlu0 0
      %2255 = vperm.xlu0 %2254, %v2041
      %v2256 = vpop.permute.xlu0 %2255
      %2259 = vset.pattern.permute.xlu0 0
      %2260 = vperm.xlu0 %2259, %v2042
      %v2261 = vpop.permute.xlu0 %2260
      %2264 = vset.pattern.permute.xlu0 0
      %2265 = vperm.xlu0 %2264, %v2043
      %v2266 = vpop.permute.xlu0 %2265
      %2269 = vset.pattern.permute.xlu0 0
      %2270 = vperm.xlu0 %2269, %v2044
      %v2271 = vpop.permute.xlu0 %2270
      %2274 = vset.pattern.permute.xlu0 0
      %2275 = vperm.xlu0 %2274, %v2045
      %v2276 = vpop.permute.xlu0 %2275
      %2279 = vset.pattern.permute.xlu0 0
      %2280 = vperm.xlu0 %2279, %v2046
      %v2281 = vpop.permute.xlu0 %2280
      %2284 = vset.pattern.permute.xlu0 0
      %2285 = vperm.xlu0 %2284, %v2047
      %v2286 = vpop.permute.xlu0 %2285
      %2289 = vset.pattern.permute.xlu0 0
      %2290 = vperm.xlu0 %2289, %v2048
      %v2291 = vpop.permute.xlu0 %2290
      %2294 = vset.pattern.permute.xlu0 0
      %2295 = vperm.xlu0 %2294, %v2049
      %v2296 = vpop.permute.xlu0 %2295
      %2299 = vset.pattern.permute.xlu0 0
      %2300 = vperm.xlu0 %2299, %v2050
      %v2301 = vpop.permute.xlu0 %2300
      %2304 = vset.pattern.permute.xlu0 0
      %2305 = vperm.xlu0 %2304, %v2051
      %v2306 = vpop.permute.xlu0 %2305
      %2309 = vset.pattern.permute.xlu0 0
      %2310 = vperm.xlu0 %2309, %v2052
      %v2311 = vpop.permute.xlu0 %2310
      %2314 = vset.pattern.permute.xlu0 0
      %2315 = vperm.xlu0 %2314, %v2053
      %v2316 = vpop.permute.xlu0 %2315
      %2319 = vset.pattern.permute.xlu0 0
      %2320 = vperm.xlu0 %2319, %v2054
      %v2321 = vpop.permute.xlu0 %2320
      %2324 = vset.pattern.permute.xlu0 0
      %2325 = vperm.xlu0 %2324, %v2055
      %v2326 = vpop.permute.xlu0 %2325
      %2329 = vset.pattern.permute.xlu0 0
      %2330 = vperm.xlu0 %2329, %v2056
      %v2331 = vpop.permute.xlu0 %2330
      %2334 = vset.pattern.permute.xlu0 0
      %2335 = vperm.xlu0 %2334, %v2057
      %v2336 = vpop.permute.xlu0 %2335
      %2339 = vset.pattern.permute.xlu0 0
      %2340 = vperm.xlu0 %2339, %v2058
      %v2341 = vpop.permute.xlu0 %2340
      %2344 = vset.pattern.permute.xlu0 0
      %2345 = vperm.xlu0 %2344, %v2059
      %v2346 = vpop.permute.xlu0 %2345
      %2349 = vset.pattern.permute.xlu0 0
      %2350 = vperm.xlu0 %2349, %v2060
      %v2351 = vpop.permute.xlu0 %2350
      %2354 = vset.pattern.permute.xlu0 0
      %2355 = vperm.xlu0 %2354, %v2061
      %v2356 = vpop.permute.xlu0 %2355
      %2359 = vset.pattern.permute.xlu0 0
      %2360 = vperm.xlu0 %2359, %v2062
      %v2361 = vpop.permute.xlu0 %2360
      %2364 = vset.pattern.permute.xlu0 0
      %2365 = vperm.xlu0 %2364, %v2063
      %v2366 = vpop.permute.xlu0 %2365
      %2369 = vset.pattern.permute.xlu0 0
      %2370 = vperm.xlu0 %2369, %v2064
      %v2371 = vpop.permute.xlu0 %2370
      %2374 = vset.pattern.permute.xlu0 0
      %2375 = vperm.xlu0 %2374, %v2065
      %v2376 = vpop.permute.xlu0 %2375
      %2379 = vset.pattern.permute.xlu0 0
      %2380 = vperm.xlu0 %2379, %v2066
      %v2381 = vpop.permute.xlu0 %2380
      %2384 = vset.pattern.permute.xlu0 0
      %2385 = vperm.xlu0 %2384, %v2067
      %v2386 = vpop.permute.xlu0 %2385
      %2389 = vset.pattern.permute.xlu0 0
      %2390 = vperm.xlu0 %2389, %v2068
      %v2391 = vpop.permute.xlu0 %2390
      %2394 = vset.pattern.permute.xlu0 0
      %2395 = vperm.xlu0 %2394, %v2069
      %v2396 = vpop.permute.xlu0 %2395
      %2399 = vset.pattern.permute.xlu0 0
      %2400 = vperm.xlu0 %2399, %v2070
      %v2401 = vpop.permute.xlu0 %2400
      %2404 = vset.pattern.permute.xlu0 0
      %2405 = vperm.xlu0 %2404, %v2071
      %v2406 = vpop.permute.xlu0 %2405
      %2409 = vset.pattern.permute.xlu0 0
      %2410 = vperm.xlu0 %2409, %v2072
      %v2411 = vpop.permute.xlu0 %2410
      %2414 = vset.pattern.permute.xlu0 0
      %2415 = vperm.xlu0 %2414, %v2073
      %v2416 = vpop.permute.xlu0 %2415
      %2419 = vset.pattern.permute.xlu0 0
      %2420 = vperm.xlu0 %2419, %v2074
      %v2421 = vpop.permute.xlu0 %2420
      %2424 = vset.pattern.permute.xlu0 0
      %2425 = vperm.xlu0 %2424, %v2075
      %v2426 = vpop.permute.xlu0 %2425
      %2429 = vset.pattern.permute.xlu0 0
      %2430 = vperm.xlu0 %2429, %v2076
      %v2431 = vpop.permute.xlu0 %2430
      %2434 = vset.pattern.permute.xlu0 0
      %2435 = vperm.xlu0 %2434, %v2077
      %v2436 = vpop.permute.xlu0 %2435
      %2439 = vset.pattern.permute.xlu0 0
      %2440 = vperm.xlu0 %2439, %v2078
      %v2441 = vpop.permute.xlu0 %2440
      %2444 = vset.pattern.permute.xlu0 0
      %2445 = vperm.xlu0 %2444, %v2079
      %v2446 = vpop.permute.xlu0 %2445
      %2449 = vset.pattern.permute.xlu0 0
      %2450 = vperm.xlu0 %2449, %v2080
      %v2451 = vpop.permute.xlu0 %2450
      %2454 = vset.pattern.permute.xlu0 0
      %2455 = vperm.xlu0 %2454, %v2081
      %v2456 = vpop.permute.xlu0 %2455
      %2459 = vset.pattern.permute.xlu0 0
      %2460 = vperm.xlu0 %2459, %v2082
      %v2461 = vpop.permute.xlu0 %2460
      %2464 = vset.pattern.permute.xlu0 0
      %2465 = vperm.xlu0 %2464, %v2083
      %v2466 = vpop.permute.xlu0 %2465
      %2469 = vset.pattern.permute.xlu0 0
      %2470 = vperm.xlu0 %2469, %v2084
      %v2471 = vpop.permute.xlu0 %2470
      %2474 = vset.pattern.permute.xlu0 0
      %2475 = vperm.xlu0 %2474, %v2085
      %v2476 = vpop.permute.xlu0 %2475
      %2479 = vset.pattern.permute.xlu0 0
      %2480 = vperm.xlu0 %2479, %v2086
      %v2481 = vpop.permute.xlu0 %2480
      %2484 = vset.pattern.permute.xlu0 0
      %2485 = vperm.xlu0 %2484, %v2087
      %v2486 = vpop.permute.xlu0 %2485
      %2489 = vset.pattern.permute.xlu0 0
      %2490 = vperm.xlu0 %2489, %v2088
      %v2491 = vpop.permute.xlu0 %2490
      %2494 = vset.pattern.permute.xlu0 0
      %2495 = vperm.xlu0 %2494, %v2089
      %v2496 = vpop.permute.xlu0 %2495
      %v2498 = vmul.f32 %v1071, %v2246
      %v2499 = vmul.f32 %v1076, %v2251
      %v2500 = vmul.f32 %v1081, %v2256
      %v2501 = vmul.f32 %v1086, %v2261
      %v2502 = vmul.f32 %v1091, %v2266
      %v2503 = vmul.f32 %v1096, %v2271
      %v2504 = vmul.f32 %v1101, %v2276
      %v2505 = vmul.f32 %v1106, %v2281
      %v2506 = vmul.f32 %v1111, %v2286
      %v2507 = vmul.f32 %v1116, %v2291
      %v2508 = vmul.f32 %v1121, %v2296
      %v2509 = vmul.f32 %v1126, %v2301
      %v2510 = vmul.f32 %v1131, %v2306
      %v2511 = vmul.f32 %v1136, %v2311
      %v2512 = vmul.f32 %v1141, %v2316
      %v2513 = vmul.f32 %v1146, %v2321
      %v2514 = vmul.f32 %v1151, %v2326
      %v2515 = vmul.f32 %v1156, %v2331
      %v2516 = vmul.f32 %v1161, %v2336
      %v2517 = vmul.f32 %v1166, %v2341
      %v2518 = vmul.f32 %v1171, %v2346
      %v2519 = vmul.f32 %v1176, %v2351
      %v2520 = vmul.f32 %v1181, %v2356
      %v2521 = vmul.f32 %v1186, %v2361
      %v2522 = vmul.f32 %v1191, %v2366
      %v2523 = vmul.f32 %v1196, %v2371
      %v2524 = vmul.f32 %v1201, %v2376
      %v2525 = vmul.f32 %v1206, %v2381
      %v2526 = vmul.f32 %v1211, %v2386
      %v2527 = vmul.f32 %v1216, %v2391
      %v2528 = vmul.f32 %v1221, %v2396
      %v2529 = vmul.f32 %v1226, %v2401
      %v2530 = vmul.f32 %v1231, %v2406
      %v2531 = vmul.f32 %v1236, %v2411
      %v2532 = vmul.f32 %v1241, %v2416
      %v2533 = vmul.f32 %v1246, %v2421
      %v2534 = vmul.f32 %v1251, %v2426
      %v2535 = vmul.f32 %v1256, %v2431
      %v2536 = vmul.f32 %v1261, %v2436
      %v2537 = vmul.f32 %v1266, %v2441
      %v2538 = vmul.f32 %v1271, %v2446
      %v2539 = vmul.f32 %v1276, %v2451
      %v2540 = vmul.f32 %v1281, %v2456
      %v2541 = vmul.f32 %v1286, %v2461
      %v2542 = vmul.f32 %v1291, %v2466
      %v2543 = vmul.f32 %v1296, %v2471
      %v2544 = vmul.f32 %v1301, %v2476
      %v2545 = vmul.f32 %v1306, %v2481
      %v2546 = vmul.f32 %v1311, %v2486
      %v2547 = vmul.f32 %v1316, %v2491
      %v2548 = vmul.f32 %v1321, %v2496
      %2550 = vset.pattern.permute.xlu0 0
      %2551 = vperm.xlu0 %2550, %v2192
      %v2552 = vpop.permute.xlu0 %2551
      %2555 = vset.pattern.permute.xlu0 0
      %2556 = vperm.xlu0 %2555, %v2193
      %v2557 = vpop.permute.xlu0 %2556
      %2560 = vset.pattern.permute.xlu0 0
      %2561 = vperm.xlu0 %2560, %v2194
      %v2562 = vpop.permute.xlu0 %2561
      %2565 = vset.pattern.permute.xlu0 0
      %2566 = vperm.xlu0 %2565, %v2195
      %v2567 = vpop.permute.xlu0 %2566
      %2570 = vset.pattern.permute.xlu0 0
      %2571 = vperm.xlu0 %2570, %v2196
      %v2572 = vpop.permute.xlu0 %2571
      %2575 = vset.pattern.permute.xlu0 0
      %2576 = vperm.xlu0 %2575, %v2197
      %v2577 = vpop.permute.xlu0 %2576
      %2580 = vset.pattern.permute.xlu0 0
      %2581 = vperm.xlu0 %2580, %v2198
      %v2582 = vpop.permute.xlu0 %2581
      %2585 = vset.pattern.permute.xlu0 0
      %2586 = vperm.xlu0 %2585, %v2199
      %v2587 = vpop.permute.xlu0 %2586
      %2590 = vset.pattern.permute.xlu0 0
      %2591 = vperm.xlu0 %2590, %v2200
      %v2592 = vpop.permute.xlu0 %2591
      %2595 = vset.pattern.permute.xlu0 0
      %2596 = vperm.xlu0 %2595, %v2201
      %v2597 = vpop.permute.xlu0 %2596
      %2600 = vset.pattern.permute.xlu0 0
      %2601 = vperm.xlu0 %2600, %v2202
      %v2602 = vpop.permute.xlu0 %2601
      %2605 = vset.pattern.permute.xlu0 0
      %2606 = vperm.xlu0 %2605, %v2203
      %v2607 = vpop.permute.xlu0 %2606
      %2610 = vset.pattern.permute.xlu0 0
      %2611 = vperm.xlu0 %2610, %v2204
      %v2612 = vpop.permute.xlu0 %2611
      %2615 = vset.pattern.permute.xlu0 0
      %2616 = vperm.xlu0 %2615, %v2205
      %v2617 = vpop.permute.xlu0 %2616
      %2620 = vset.pattern.permute.xlu0 0
      %2621 = vperm.xlu0 %2620, %v2206
      %v2622 = vpop.permute.xlu0 %2621
      %2625 = vset.pattern.permute.xlu0 0
      %2626 = vperm.xlu0 %2625, %v2207
      %v2627 = vpop.permute.xlu0 %2626
      %2630 = vset.pattern.permute.xlu0 0
      %2631 = vperm.xlu0 %2630, %v2208
      %v2632 = vpop.permute.xlu0 %2631
      %2635 = vset.pattern.permute.xlu0 0
      %2636 = vperm.xlu0 %2635, %v2209
      %v2637 = vpop.permute.xlu0 %2636
      %2640 = vset.pattern.permute.xlu0 0
      %2641 = vperm.xlu0 %2640, %v2210
      %v2642 = vpop.permute.xlu0 %2641
      %2645 = vset.pattern.permute.xlu0 0
      %2646 = vperm.xlu0 %2645, %v2211
      %v2647 = vpop.permute.xlu0 %2646
      %2650 = vset.pattern.permute.xlu0 0
      %2651 = vperm.xlu0 %2650, %v2212
      %v2652 = vpop.permute.xlu0 %2651
      %2655 = vset.pattern.permute.xlu0 0
      %2656 = vperm.xlu0 %2655, %v2213
      %v2657 = vpop.permute.xlu0 %2656
      %2660 = vset.pattern.permute.xlu0 0
      %2661 = vperm.xlu0 %2660, %v2214
      %v2662 = vpop.permute.xlu0 %2661
      %2665 = vset.pattern.permute.xlu0 0
      %2666 = vperm.xlu0 %2665, %v2215
      %v2667 = vpop.permute.xlu0 %2666
      %2670 = vset.pattern.permute.xlu0 0
      %2671 = vperm.xlu0 %2670, %v2216
      %v2672 = vpop.permute.xlu0 %2671
      %2675 = vset.pattern.permute.xlu0 0
      %2676 = vperm.xlu0 %2675, %v2217
      %v2677 = vpop.permute.xlu0 %2676
      %2680 = vset.pattern.permute.xlu0 0
      %2681 = vperm.xlu0 %2680, %v2218
      %v2682 = vpop.permute.xlu0 %2681
      %2685 = vset.pattern.permute.xlu0 0
      %2686 = vperm.xlu0 %2685, %v2219
      %v2687 = vpop.permute.xlu0 %2686
      %2690 = vset.pattern.permute.xlu0 0
      %2691 = vperm.xlu0 %2690, %v2220
      %v2692 = vpop.permute.xlu0 %2691
      %2695 = vset.pattern.permute.xlu0 0
      %2696 = vperm.xlu0 %2695, %v2221
      %v2697 = vpop.permute.xlu0 %2696
      %2700 = vset.pattern.permute.xlu0 0
      %2701 = vperm.xlu0 %2700, %v2222
      %v2702 = vpop.permute.xlu0 %2701
      %2705 = vset.pattern.permute.xlu0 0
      %2706 = vperm.xlu0 %2705, %v2223
      %v2707 = vpop.permute.xlu0 %2706
      %2710 = vset.pattern.permute.xlu0 0
      %2711 = vperm.xlu0 %2710, %v2224
      %v2712 = vpop.permute.xlu0 %2711
      %2715 = vset.pattern.permute.xlu0 0
      %2716 = vperm.xlu0 %2715, %v2225
      %v2717 = vpop.permute.xlu0 %2716
      %2720 = vset.pattern.permute.xlu0 0
      %2721 = vperm.xlu0 %2720, %v2226
      %v2722 = vpop.permute.xlu0 %2721
      %2725 = vset.pattern.permute.xlu0 0
      %2726 = vperm.xlu0 %2725, %v2227
      %v2727 = vpop.permute.xlu0 %2726
      %2730 = vset.pattern.permute.xlu0 0
      %2731 = vperm.xlu0 %2730, %v2228
      %v2732 = vpop.permute.xlu0 %2731
      %2735 = vset.pattern.permute.xlu0 0
      %2736 = vperm.xlu0 %2735, %v2229
      %v2737 = vpop.permute.xlu0 %2736
      %2740 = vset.pattern.permute.xlu0 0
      %2741 = vperm.xlu0 %2740, %v2230
      %v2742 = vpop.permute.xlu0 %2741
      %2745 = vset.pattern.permute.xlu0 0
      %2746 = vperm.xlu0 %2745, %v2231
      %v2747 = vpop.permute.xlu0 %2746
      %2750 = vset.pattern.permute.xlu0 0
      %2751 = vperm.xlu0 %2750, %v2232
      %v2752 = vpop.permute.xlu0 %2751
      %2755 = vset.pattern.permute.xlu0 0
      %2756 = vperm.xlu0 %2755, %v2233
      %v2757 = vpop.permute.xlu0 %2756
      %2760 = vset.pattern.permute.xlu0 0
      %2761 = vperm.xlu0 %2760, %v2234
      %v2762 = vpop.permute.xlu0 %2761
      %2765 = vset.pattern.permute.xlu0 0
      %2766 = vperm.xlu0 %2765, %v2235
      %v2767 = vpop.permute.xlu0 %2766
      %2770 = vset.pattern.permute.xlu0 0
      %2771 = vperm.xlu0 %2770, %v2236
      %v2772 = vpop.permute.xlu0 %2771
      %2775 = vset.pattern.permute.xlu0 0
      %2776 = vperm.xlu0 %2775, %v2237
      %v2777 = vpop.permute.xlu0 %2776
      %2780 = vset.pattern.permute.xlu0 0
      %2781 = vperm.xlu0 %2780, %v2238
      %v2782 = vpop.permute.xlu0 %2781
      %2785 = vset.pattern.permute.xlu0 0
      %2786 = vperm.xlu0 %2785, %v2239
      %v2787 = vpop.permute.xlu0 %2786
      %2790 = vset.pattern.permute.xlu0 0
      %2791 = vperm.xlu0 %2790, %v2240
      %v2792 = vpop.permute.xlu0 %2791
      %2795 = vset.pattern.permute.xlu0 0
      %2796 = vperm.xlu0 %2795, %v2241
      %v2797 = vpop.permute.xlu0 %2796
      %2800 = vset.pattern.permute.xlu0 0
      %2801 = vperm.xlu0 %2800, %v2242
      %v2802 = vpop.permute.xlu0 %2801
      %v2804 = vadd.f32 %v2498, %v2552
      %v2805 = vadd.f32 %v2499, %v2557
      %v2806 = vadd.f32 %v2500, %v2562
      %v2807 = vadd.f32 %v2501, %v2567
      %v2808 = vadd.f32 %v2502, %v2572
      %v2809 = vadd.f32 %v2503, %v2577
      %v2810 = vadd.f32 %v2504, %v2582
      %v2811 = vadd.f32 %v2505, %v2587
      %v2812 = vadd.f32 %v2506, %v2592
      %v2813 = vadd.f32 %v2507, %v2597
      %v2814 = vadd.f32 %v2508, %v2602
      %v2815 = vadd.f32 %v2509, %v2607
      %v2816 = vadd.f32 %v2510, %v2612
      %v2817 = vadd.f32 %v2511, %v2617
      %v2818 = vadd.f32 %v2512, %v2622
      %v2819 = vadd.f32 %v2513, %v2627
      %v2820 = vadd.f32 %v2514, %v2632
      %v2821 = vadd.f32 %v2515, %v2637
      %v2822 = vadd.f32 %v2516, %v2642
      %v2823 = vadd.f32 %v2517, %v2647
      %v2824 = vadd.f32 %v2518, %v2652
      %v2825 = vadd.f32 %v2519, %v2657
      %v2826 = vadd.f32 %v2520, %v2662
      %v2827 = vadd.f32 %v2521, %v2667
      %v2828 = vadd.f32 %v2522, %v2672
      %v2829 = vadd.f32 %v2523, %v2677
      %v2830 = vadd.f32 %v2524, %v2682
      %v2831 = vadd.f32 %v2525, %v2687
      %v2832 = vadd.f32 %v2526, %v2692
      %v2833 = vadd.f32 %v2527, %v2697
      %v2834 = vadd.f32 %v2528, %v2702
      %v2835 = vadd.f32 %v2529, %v2707
      %v2836 = vadd.f32 %v2530, %v2712
      %v2837 = vadd.f32 %v2531, %v2717
      %v2838 = vadd.f32 %v2532, %v2722
      %v2839 = vadd.f32 %v2533, %v2727
      %v2840 = vadd.f32 %v2534, %v2732
      %v2841 = vadd.f32 %v2535, %v2737
      %v2842 = vadd.f32 %v2536, %v2742
      %v2843 = vadd.f32 %v2537, %v2747
      %v2844 = vadd.f32 %v2538, %v2752
      %v2845 = vadd.f32 %v2539, %v2757
      %v2846 = vadd.f32 %v2540, %v2762
      %v2847 = vadd.f32 %v2541, %v2767
      %v2848 = vadd.f32 %v2542, %v2772
      %v2849 = vadd.f32 %v2543, %v2777
      %v2850 = vadd.f32 %v2544, %v2782
      %v2851 = vadd.f32 %v2545, %v2787
      %v2852 = vadd.f32 %v2546, %v2792
      %v2853 = vadd.f32 %v2547, %v2797
      %v2854 = vadd.f32 %v2548, %v2802
      %2855 = vst.msk [vmem:[%s273] sm:$0xff] %vm1324, %v2804
      %2856 = vst.msk [vmem:[%s273 + $0x8] sm:$0xff] %vm1324, %v2805
      %2857 = vst.msk [vmem:[%s273 + $0x10] sm:$0xff] %vm1324, %v2806
      %2858 = vst.msk [vmem:[%s273 + $0x18] sm:$0xff] %vm1324, %v2807
      %2859 = vst.msk [vmem:[%s273 + $0x20] sm:$0xff] %vm1324, %v2808
      %2860 = vst.msk [vmem:[%s273 + $0x28] sm:$0xff] %vm1324, %v2809
      %2861 = vst.msk [vmem:[%s273 + $0x30] sm:$0xff] %vm1324, %v2810
      %2862 = vst.msk [vmem:[%s273 + $0x38] sm:$0xff] %vm1324, %v2811
      %2863 = vst.msk [vmem:[%s273 + $0x40] sm:$0xff] %vm1324, %v2812
      %2864 = vst.msk [vmem:[%s273 + $0x48] sm:$0xff] %vm1324, %v2813
      %2865 = vst.msk [vmem:[%s273 + $0x50] sm:$0xff] %vm1324, %v2814
      %2866 = vst.msk [vmem:[%s273 + $0x58] sm:$0xff] %vm1324, %v2815
      %2867 = vst.msk [vmem:[%s273 + $0x60] sm:$0xff] %vm1324, %v2816
      %2868 = vst.msk [vmem:[%s273 + $0x68] sm:$0xff] %vm1324, %v2817
      %2869 = vst.msk [vmem:[%s273 + $0x70] sm:$0xff] %vm1324, %v2818
      %2870 = vst.msk [vmem:[%s273 + $0x78] sm:$0xff] %vm1324, %v2819
      %2871 = vst.msk [vmem:[%s273 + $0x80] sm:$0xff] %vm1324, %v2820
      %2872 = vst.msk [vmem:[%s273 + $0x88] sm:$0xff] %vm1324, %v2821
      %2873 = vst.msk [vmem:[%s273 + $0x90] sm:$0xff] %vm1324, %v2822
      %2874 = vst.msk [vmem:[%s273 + $0x98] sm:$0xff] %vm1324, %v2823
      %2875 = vst.msk [vmem:[%s273 + $0xa0] sm:$0xff] %vm1324, %v2824
      %2876 = vst.msk [vmem:[%s273 + $0xa8] sm:$0xff] %vm1324, %v2825
      %2877 = vst.msk [vmem:[%s273 + $0xb0] sm:$0xff] %vm1324, %v2826
      %2878 = vst.msk [vmem:[%s273 + $0xb8] sm:$0xff] %vm1324, %v2827
      %2879 = vst.msk [vmem:[%s273 + $0xc0] sm:$0xff] %vm1324, %v2828
      %2880 = vst.msk [vmem:[%s273 + $0xc8] sm:$0xff] %vm1324, %v2829
      %2881 = vst.msk [vmem:[%s273 + $0xd0] sm:$0xff] %vm1324, %v2830
      %2882 = vst.msk [vmem:[%s273 + $0xd8] sm:$0xff] %vm1324, %v2831
      %2883 = vst.msk [vmem:[%s273 + $0xe0] sm:$0xff] %vm1324, %v2832
      %2884 = vst.msk [vmem:[%s273 + $0xe8] sm:$0xff] %vm1324, %v2833
      %2885 = vst.msk [vmem:[%s273 + $0xf0] sm:$0xff] %vm1324, %v2834
      %2886 = vst.msk [vmem:[%s273 + $0xf8] sm:$0xff] %vm1324, %v2835
      %2887 = vst.msk [vmem:[%s273 + $0x100] sm:$0xff] %vm1324, %v2836
      %2888 = vst.msk [vmem:[%s273 + $0x108] sm:$0xff] %vm1324, %v2837
      %2889 = vst.msk [vmem:[%s273 + $0x110] sm:$0xff] %vm1324, %v2838
      %2890 = vst.msk [vmem:[%s273 + $0x118] sm:$0xff] %vm1324, %v2839
      %2891 = vst.msk [vmem:[%s273 + $0x120] sm:$0xff] %vm1324, %v2840
      %2892 = vst.msk [vmem:[%s273 + $0x128] sm:$0xff] %vm1324, %v2841
      %2893 = vst.msk [vmem:[%s273 + $0x130] sm:$0xff] %vm1324, %v2842
      %2894 = vst.msk [vmem:[%s273 + $0x138] sm:$0xff] %vm1324, %v2843
      %2895 = vst.msk [vmem:[%s273 + $0x140] sm:$0xff] %vm1324, %v2844
      %2896 = vst.msk [vmem:[%s273 + $0x148] sm:$0xff] %vm1324, %v2845
      %2897 = vst.msk [vmem:[%s273 + $0x150] sm:$0xff] %vm1324, %v2846
      %2898 = vst.msk [vmem:[%s273 + $0x158] sm:$0xff] %vm1324, %v2847
      %2899 = vst.msk [vmem:[%s273 + $0x160] sm:$0xff] %vm1324, %v2848
      %2900 = vst.msk [vmem:[%s273 + $0x168] sm:$0xff] %vm1324, %v2849
      %2901 = vst.msk [vmem:[%s273 + $0x170] sm:$0xff] %vm1324, %v2850
      %2902 = vst.msk [vmem:[%s273 + $0x178] sm:$0xff] %vm1324, %v2851
      %2903 = vst.msk [vmem:[%s273 + $0x180] sm:$0xff] %vm1324, %v2852
      %2904 = vst.msk [vmem:[%s273 + $0x188] sm:$0xff] %vm1324, %v2853
      %2905 = vst.msk [vmem:[%s273 + $0x190] sm:$0xff] %vm1324, %v2854
      %s2906 = smul.u32 51, %s16
      %p2907 = scmp.lt.s32.totalorder %s2906, 203
      %s2908 = scalar_select %p2907, %s2906, 203
      %s2909 = smul.addr %s2908, 8
      %s2910 = scalar_lea.vmem %s5, %s2909
      // Predicated region
      $region41: #{tpu_custom_call.1} parent=39 // pred_check
        %p2911 = pneg %p154
      $region42: #{tpu_custom_call.1} parent=39 // pred_check_branch
        %2913 = sbr.rel (%p2911) target = $region44
      $region43: #{tpu_custom_call.1} parent=39 // pred_region
        %s2914 = smul.u32 51, %s16
      $region44: #{tpu_custom_call.1} parent=39 // pred_fallthru
        _
    $region40: #{tpu_custom_call.1} parent=5 // pred_fallthru
      _
    %p2915 = scmp.le.s32.totalorder 2, %s11
    // Predicated region
    $region45: #{tpu_custom_call.1} parent=5 // pred_check
      %p2916 = pneg %p2915
    $region46: #{tpu_custom_call.1} parent=5 // pred_check_branch
      %2918 = sbr.rel (%p2916) target = $region48
    $region47: #{tpu_custom_call.1} parent=5 // pred_region
      %s2919 = ssub.s32 %s11, 2
      // Predicated region
      $region49: #{tpu_custom_call.1} parent=47 // pred_check
        %p2920 = pneg %p160
      $region50: #{tpu_custom_call.1} parent=47 // pred_check_branch
        %2922 = sbr.rel (%p2920) target = $region52
      $region51: #{tpu_custom_call.1} parent=47 // pred_region
        %s2923 = smul.u32 51, %s17
        %p2924 = scmp.lt.s32.totalorder %s2923, 203
        %s2925 = scalar_select %p2924, %s2923, 203
        %s2926 = smul.addr %s2925, 8
        %s2927 = scalar_lea.vmem %s5, %s2926
      $region52: #{tpu_custom_call.1} parent=47 // pred_fallthru
        _
    $region48: #{tpu_custom_call.1} parent=5 // pred_fallthru
      _
  $region6: #{tpu_custom_call.1} parent=0 // loop_footer
    %s15 = sadd.s32 1, %s11
  $region7: #{tpu_custom_call.1} parent=0 // loop_footer_branch
    %10 = sbr.rel target = $region3
  $region8: #{tpu_custom_call.1} parent=0 // loop_exit
    _

</llo_original>
